<compile_context>
chip_gen: v7x
topology: tpu7x:2x2x1
jax: 0.10.0
libtpu: 0.0.40
codegen_flags: <defaults>
</compile_context>

<pallas_src>
import functools

import jax
import jax.numpy as jnp
from jax.experimental import pallas as pl
from jax.experimental.pallas import tpu as pltpu

HIDDEN = 400          # logical feature size of the module
HP = 512              # lane-aligned padded feature size (multiple of 128)


def _round_up(n, m):
    return ((n + m - 1) // m) * m


# ----------------------------------------------------------------------------
# Kernel: one batch tile -> (mu, logvar) tiles.  Both heads share the x tile.
# ----------------------------------------------------------------------------
def _mu_logvar_kernel(x_ref, wmu_ref, bmu_ref, wlv_ref, blv_ref,
                      mu_ref, lv_ref):
    x = x_ref[...]                                        # (TILE_B, HP) f32
    # Upcast bf16-resident weights in VMEM (cheap VPU convert), accumulate f32.
    wmu = wmu_ref[...].astype(jnp.float32)
    mu = jnp.dot(x, wmu, preferred_element_type=jnp.float32)
    mu_ref[...] = (mu + bmu_ref[...]).astype(mu_ref.dtype)

    wlv = wlv_ref[...].astype(jnp.float32)
    lv = jnp.dot(x, wlv, preferred_element_type=jnp.float32)
    lv_ref[...] = (lv + blv_ref[...]).astype(lv_ref.dtype)


# ----------------------------------------------------------------------------
# One-time parameter preparation (outside the hot path).
# PyTorch layout (out, in) -> (in, out), zero-pad 400 -> 512, cast weights.
# ----------------------------------------------------------------------------
def prepare_params(params, weight_dtype=jnp.bfloat16):
    def prep_w(w):
        w = jnp.asarray(w, jnp.float32).T                  # (in, out)
        wp = jnp.zeros((HP, HP), jnp.float32).at[:HIDDEN, :HIDDEN].set(w)
        return wp.astype(weight_dtype)

    def prep_b(b):
        b = jnp.asarray(b, jnp.float32).reshape(1, -1)
        return jnp.zeros((1, HP), jnp.float32).at[:, :HIDDEN].set(b)

    return {
        "w_mu": prep_w(params["w_mu"]), "b_mu": prep_b(params["b_mu"]),
        "w_logvar": prep_w(params["w_logvar"]),
        "b_logvar": prep_b(params["b_logvar"]),
    }


# ----------------------------------------------------------------------------
# Forward wrapper: pad x, run the gridded kernel, slice outputs back.
# ----------------------------------------------------------------------------
@functools.partial(jax.jit, static_argnames=("tile_b",))
def context_to_latent_forward(x, prepped, tile_b=256):
    x = jnp.asarray(x, jnp.float32)
    B = x.shape[0]

    tb = min(tile_b, _round_up(B, 8))      # batch tile (multiple of 8 sublanes)
    bp = _round_up(B, tb)                  # padded batch
    xp = jnp.zeros((bp, HP), jnp.float32).at[:B, :HIDDEN].set(x)

    grid = (bp // tb,)
    act_spec = pl.BlockSpec((tb, HP), lambda i: (i, 0))
    w_spec = pl.BlockSpec((HP, HP), lambda i: (0, 0))      # resident weights
    b_spec = pl.BlockSpec((1, HP), lambda i: (0, 0))       # resident biases

    w_bytes = 2 * HP * HP * prepped["w_mu"].dtype.itemsize
    cost = pl.CostEstimate(
        flops=2 * (2 * bp * HP * HP),                      # two matmuls
        transcendentals=0,
        bytes_accessed=bp * HP * 4 + w_bytes + 2 * HP * 4 + 2 * bp * HP * 4,
    )

    mu, logvar = pl.pallas_call(
        _mu_logvar_kernel,
        grid=grid,
        in_specs=[act_spec, w_spec, b_spec, w_spec, b_spec],
        out_specs=(act_spec, act_spec),
        out_shape=(jax.ShapeDtypeStruct((bp, HP), jnp.float32),
                   jax.ShapeDtypeStruct((bp, HP), jnp.float32)),
        compiler_params=pltpu.CompilerParams(
            dimension_semantics=("parallel",)),
        cost_estimate=cost,
    )(xp, prepped["w_mu"], prepped["b_mu"],
      prepped["w_logvar"], prepped["b_logvar"])

    return mu[:B, :HIDDEN], logvar[:B, :HIDDEN]


# ----------------------------------------------------------------------------
# Parameter init matching PyTorch nn.Linear default: U(-1/sqrt(in), 1/sqrt(in))
# ----------------------------------------------------------------------------
def init_params(key):
    bound = 1.0 / (HIDDEN ** 0.5)
    ks = jax.random.split(key, 4)
    u = lambda k, shape: jax.random.uniform(
        k, shape, dtype=jnp.float32, minval=-bound, maxval=bound)
    return {
        "w_mu": u(ks[0], (HIDDEN, HIDDEN)), "b_mu": u(ks[1], (HIDDEN,)),
        "w_logvar": u(ks[2], (HIDDEN, HIDDEN)), "b_logvar": u(ks[3], (HIDDEN,)),
    }


# ----------------------------------------------------------------------------
# Pure-JAX references.
# ----------------------------------------------------------------------------
def reference_forward(x, params):
    """Exact PyTorch semantics (f32 weights)."""
    mu = x @ params["w_mu"].T + params["b_mu"]
    logvar = x @ params["w_logvar"].T + params["b_logvar"]
    return mu, logvar


def reference_forward_prepped(x, prepped):
    """Matched-precision reference using the same padded / bf16-cast weights."""
    B = x.shape[0]
    xp = jnp.zeros((B, HP), jnp.float32).at[:, :HIDDEN].set(x)
    mu = xp @ prepped["w_mu"].astype(jnp.float32) + prepped["b_mu"]
    lv = xp @ prepped["w_logvar"].astype(jnp.float32) + prepped["b_logvar"]
    return mu[:, :HIDDEN], lv[:, :HIDDEN]


if __name__ == "__main__":
    key = jax.random.PRNGKey(0)
    pkey, xkey = jax.random.split(key)
    params = init_params(pkey)
    prepped = prepare_params(params)          # one-time: transpose/pad/bf16

    B = 8
    x = jax.random.normal(xkey, (B, HIDDEN), dtype=jnp.float32)

    mu, logvar = context_to_latent_forward(x, prepped)
    mu, logvar = jax.block_until_ready((mu, logvar))

    assert mu.shape == (B, HIDDEN), mu.shape
    assert logvar.shape == (B, HIDDEN), logvar.shape

    # 1) Matched-precision check (same bf16-cast, zero-padded weights).
    mu_rp, lv_rp = reference_forward_prepped(x, prepped)
    assert jnp.allclose(mu, mu_rp, atol=5e-3, rtol=5e-3), "mu mismatch (matched)"
    assert jnp.allclose(logvar, lv_rp, atol=5e-3, rtol=5e-3), "logvar mismatch (matched)"

    # 2) Semantics check vs exact-f32 PyTorch reference (loose tol: bf16 weights
    #    + default MXU bf16 multi-pass for f32 matmul).
    mu_rf, lv_rf = reference_forward(x, params)
    assert jnp.allclose(mu, mu_rf, atol=5e-2), "mu mismatch vs f32 reference"
    assert jnp.allclose(logvar, lv_rf, atol=5e-2), "logvar mismatch vs f32 reference"

    print("KERNEL_OK")
</pallas_src>

<mosaic_0001>
module attributes {stable_mosaic.version = 11 : i64} {
  func.func @_mu_logvar_kernel(%arg0: i32, %arg1: memref<8x512xf32, #tpu.memory_space<vmem>>, %arg2: memref<512x512xbf16, #tpu.memory_space<vmem>>, %arg3: memref<1x512xf32, #tpu.memory_space<vmem>>, %arg4: memref<512x512xbf16, #tpu.memory_space<vmem>>, %arg5: memref<1x512xf32, #tpu.memory_space<vmem>>, %arg6: memref<8x512xf32, #tpu.memory_space<vmem>>, %arg7: memref<8x512xf32, #tpu.memory_space<vmem>>) attributes {dimension_semantics = [#tpu.dimension_semantics<parallel>], iteration_bounds = array<i64: 1>, scalar_prefetch = 0 : i64, scratch_operands = 0 : i64, tpu.core_type = #tpu.core_type<tc>, window_params = [{transform_indices = @transform_0, window_bounds = array<i64: 8, 512>}, {pipeline_mode = #tpu.pipeline_mode<synchronous>, transform_indices = @transform_1, window_bounds = array<i64: 512, 512>}, {pipeline_mode = #tpu.pipeline_mode<synchronous>, transform_indices = @transform_2, window_bounds = array<i64: 1, 512>}, {pipeline_mode = #tpu.pipeline_mode<synchronous>, transform_indices = @transform_3, window_bounds = array<i64: 512, 512>}, {pipeline_mode = #tpu.pipeline_mode<synchronous>, transform_indices = @transform_4, window_bounds = array<i64: 1, 512>}, {transform_indices = @transform_5, window_bounds = array<i64: 8, 512>}, {transform_indices = @transform_6, window_bounds = array<i64: 8, 512>}]} {
    %c0 = arith.constant 0 : index
    %c0_0 = arith.constant 0 : index
    %0 = vector.load %arg1[%c0, %c0_0] : memref<8x512xf32, #tpu.memory_space<vmem>>, vector<8x512xf32>
    %c0_1 = arith.constant 0 : index
    %c0_2 = arith.constant 0 : index
    %1 = vector.load %arg2[%c0_1, %c0_2] : memref<512x512xbf16, #tpu.memory_space<vmem>>, vector<512x512xbf16>
    %2 = arith.extf %1 : vector<512x512xbf16> to vector<512x512xf32>
    %cst = arith.constant dense<0.000000e+00> : vector<8x512xf32>
    %3 = tpu.matmul %0, %2, %cst {dimension_numbers = #tpu.dot_dimension_numbers<[1], [0], [0], [1], [0, 0, 1, 1], [], []>} : vector<8x512xf32>, vector<512x512xf32>, vector<8x512xf32> -> vector<8x512xf32>
    %c0_3 = arith.constant 0 : index
    %c0_4 = arith.constant 0 : index
    %4 = vector.load %arg3[%c0_3, %c0_4] : memref<1x512xf32, #tpu.memory_space<vmem>>, vector<1x512xf32>
    %5 = vector.broadcast %4 : vector<1x512xf32> to vector<8x512xf32>
    %6 = arith.addf %3, %5 : vector<8x512xf32>
    %c0_5 = arith.constant 0 : index
    %c0_6 = arith.constant 0 : index
    %7 = vector.load %arg6[%c0_5, %c0_6] : memref<8x512xf32, #tpu.memory_space<vmem>>, vector<8x512xf32>
    tpu.vector_store %arg6[%c0_5, %c0_6], %6 {strides = array<i32>} : memref<8x512xf32, #tpu.memory_space<vmem>>, vector<8x512xf32>,
    %c0_7 = arith.constant 0 : index
    %c0_8 = arith.constant 0 : index
    %8 = vector.load %arg4[%c0_7, %c0_8] : memref<512x512xbf16, #tpu.memory_space<vmem>>, vector<512x512xbf16>
    %9 = arith.extf %8 : vector<512x512xbf16> to vector<512x512xf32>
    %cst_9 = arith.constant dense<0.000000e+00> : vector<8x512xf32>
    %10 = tpu.matmul %0, %9, %cst_9 {dimension_numbers = #tpu.dot_dimension_numbers<[1], [0], [0], [1], [0, 0, 1, 1], [], []>} : vector<8x512xf32>, vector<512x512xf32>, vector<8x512xf32> -> vector<8x512xf32>
    %c0_10 = arith.constant 0 : index
    %c0_11 = arith.constant 0 : index
    %11 = vector.load %arg5[%c0_10, %c0_11] : memref<1x512xf32, #tpu.memory_space<vmem>>, vector<1x512xf32>
    %12 = vector.broadcast %11 : vector<1x512xf32> to vector<8x512xf32>
    %13 = arith.addf %10, %12 : vector<8x512xf32>
    %c0_12 = arith.constant 0 : index
    %c0_13 = arith.constant 0 : index
    %14 = vector.load %arg7[%c0_12, %c0_13] : memref<8x512xf32, #tpu.memory_space<vmem>>, vector<8x512xf32>
    tpu.vector_store %arg7[%c0_12, %c0_13], %13 {strides = array<i32>} : memref<8x512xf32, #tpu.memory_space<vmem>>, vector<8x512xf32>,
    return
  }
  func.func @transform_0(%arg0: i32) -> (i32, i32) {
    %c0_i32 = arith.constant 0 : i32
    %c0_i32_0 = arith.constant 0 : i32
    return %arg0, %c0_i32 : i32, i32
  }
  func.func @transform_1(%arg0: i32) -> (i32, i32) {
    %c0_i32 = arith.constant 0 : i32
    %c0_i32_0 = arith.constant 0 : i32
    %c0_i32_1 = arith.constant 0 : i32
    return %c0_i32, %c0_i32_0 : i32, i32
  }
  func.func @transform_2(%arg0: i32) -> (i32, i32) {
    %c0_i32 = arith.constant 0 : i32
    %c0_i32_0 = arith.constant 0 : i32
    %c0_i32_1 = arith.constant 0 : i32
    return %c0_i32, %c0_i32_0 : i32, i32
  }
  func.func @transform_3(%arg0: i32) -> (i32, i32) {
    %c0_i32 = arith.constant 0 : i32
    %c0_i32_0 = arith.constant 0 : i32
    %c0_i32_1 = arith.constant 0 : i32
    return %c0_i32, %c0_i32_0 : i32, i32
  }
  func.func @transform_4(%arg0: i32) -> (i32, i32) {
    %c0_i32 = arith.constant 0 : i32
    %c0_i32_0 = arith.constant 0 : i32
    %c0_i32_1 = arith.constant 0 : i32
    return %c0_i32, %c0_i32_0 : i32, i32
  }
  func.func @transform_5(%arg0: i32) -> (i32, i32) {
    %c0_i32 = arith.constant 0 : i32
    %c0_i32_0 = arith.constant 0 : i32
    return %arg0, %c0_i32 : i32, i32
  }
  func.func @transform_6(%arg0: i32) -> (i32, i32) {
    %c0_i32 = arith.constant 0 : i32
    %c0_i32_0 = arith.constant 0 : i32
    return %arg0, %c0_i32 : i32, i32
  }
}

</mosaic_0001>

<llo_original>
// kernel: context_to_latent_forward.1
$region0: #{context_to_latent_forward.1}
  #allocation0 [shape = 'u32[]', space=smem, size = 0x4, offset = 0x4, fixed_abs, tag = 'smem constant byte address 0x4 - core index']
  #allocation1 [shape = 'u32[144,128]{1,0:T(1,128)}', space=vmem, size = 0x12000, scoped, tag = 'internal scratch']
  %s0 = inlined_call_operand.vmem [shape: f32[8,512], index: 0, kind: input, shape index: {}]
  %s1 = inlined_call_operand.hbm [shape: bf16[512,512], index: 1, kind: input, shape index: {}]
  %s2 = inlined_call_operand.vmem [shape: f32[1,512], index: 2, kind: input, shape index: {}]
  %s3 = inlined_call_operand.hbm [shape: bf16[512,512], index: 3, kind: input, shape index: {}]
  %s4 = inlined_call_operand.vmem [shape: f32[1,512], index: 4, kind: input, shape index: {}]
  %s5 = inlined_call_operand.hbm [shape: f32[8,512], index: 5, kind: output, shape index: {0}]
  %s6 = inlined_call_operand.hbm [shape: f32[8,512], index: 6, kind: output, shape index: {1}]
  %7 = xla_tuple %s5, %s6
  %s8 = sld [smem:[#allocation0]]
  $region46: #{context_to_latent_forward.1} parent=0
    _
  %s10 = ssub.s32 1, %s8
  %s11 = scalar_select 0, %s10, %s8
  $region1: #{context_to_latent_forward.1} parent=0
    #allocation2 [shape = 'u8[524288]{0}', space=vmem, size = 0x80000, scoped, tag = 'input window, operand 1, single buffered']
    #allocation3 [shape = 's32[1]{0}', space=sflag, size = 0x4, scoped, tag = 'scoped memory for context_to_latent_forward.1']
    #allocation4 [shape = 's32[1]{0}', space=sflag, size = 0x4, scoped, tag = 'scoped memory for context_to_latent_forward.1']
    #allocation5 [shape = 'u8[524288]{0}', space=vmem, size = 0x80000, scoped, tag = 'input window, operand 3, single buffered']
    #allocation6 [shape = 's32[1]{0}', space=sflag, size = 0x4, scoped, tag = 'scoped memory for context_to_latent_forward.1']
    #allocation7 [shape = 'u8[16384]{0}', space=vmem, size = 0x4000, scoped, tag = 'output window, operand 0, single buffered']
    #allocation8 [shape = 'u8[16384]{0}', space=vmem, size = 0x4000, scoped, tag = 'output window, operand 1, single buffered']
    #allocation9 [shape = 's32[1]{0}', space=sflag, size = 0x4, scoped, tag = 'scoped memory for context_to_latent_forward.1']
    %12 = vsyncpa [#allocation3], 0
    %13 = vsyncpa [#allocation6], 0
    %14 = vsyncpa [#allocation4], 0
    %15 = vsyncpa [#allocation9], 0
    // Predicated region
    $region2: #{context_to_latent_forward.1} parent=1 // pred_check
      _
    $region3: #{context_to_latent_forward.1} parent=1 // pred_check_branch
      %17 = sbr.rel (0) target = $region5
    $region4: #{context_to_latent_forward.1} parent=1 // pred_region
      _
    $region5: #{context_to_latent_forward.1} parent=1 // pred_fallthru
      _
    // Predicated region
    $region6: #{context_to_latent_forward.1} parent=1 // pred_check
      _
    $region7: #{context_to_latent_forward.1} parent=1 // pred_check_branch
      %19 = sbr.rel (0) target = $region9
    $region8: #{context_to_latent_forward.1} parent=1 // pred_region
      %s21 = ssub.s32 16384, 16384
      %22 = vsyncadd [#allocation3], %s21
      %s23 = sshll.u32 [#allocation2], 4
      %s24 = int_to_ptr.vmem [resolvable:$true] %s23
      %29 = dma.hbm_to_vmem [thread:$0]  %s1, 16384, %s24, [#allocation3], 256, 256, 16
    $region9: #{context_to_latent_forward.1} parent=1 // pred_fallthru
      _
    // Predicated region
    $region10: #{context_to_latent_forward.1} parent=1 // pred_check
      _
    $region11: #{context_to_latent_forward.1} parent=1 // pred_check_branch
      %31 = sbr.rel (0) target = $region13
    $region12: #{context_to_latent_forward.1} parent=1 // pred_region
      _
    $region13: #{context_to_latent_forward.1} parent=1 // pred_fallthru
      _
    // Predicated region
    $region14: #{context_to_latent_forward.1} parent=1 // pred_check
      _
    $region15: #{context_to_latent_forward.1} parent=1 // pred_check_branch
      %33 = sbr.rel (0) target = $region17
    $region16: #{context_to_latent_forward.1} parent=1 // pred_region
      %s35 = ssub.s32 16384, 16384
      %36 = vsyncadd [#allocation6], %s35
      %s37 = sshll.u32 [#allocation5], 4
      %s38 = int_to_ptr.vmem [resolvable:$true] %s37
      %43 = dma.hbm_to_vmem [thread:$0]  %s3, 16384, %s38, [#allocation6], 256, 256, 16
    $region17: #{context_to_latent_forward.1} parent=1 // pred_fallthru
      _
    // Predicated region
    $region18: #{context_to_latent_forward.1} parent=1 // pred_check
      _
    $region19: #{context_to_latent_forward.1} parent=1 // pred_check_branch
      %45 = sbr.rel (0) target = $region21
    $region20: #{context_to_latent_forward.1} parent=1 // pred_region
      _
    $region21: #{context_to_latent_forward.1} parent=1 // pred_fallthru
      _
    // Predicated region
    $region22: #{context_to_latent_forward.1} parent=1 // pred_check
      _
    $region23: #{context_to_latent_forward.1} parent=1 // pred_check_branch
      %47 = sbr.rel (0) target = $region25
    $region24: #{context_to_latent_forward.1} parent=1 // pred_region
      %48 = dma.done [#allocation3], 16384
    $region25: #{context_to_latent_forward.1} parent=1 // pred_fallthru
      _
    // Predicated region
    $region26: #{context_to_latent_forward.1} parent=1 // pred_check
      _
    $region27: #{context_to_latent_forward.1} parent=1 // pred_check_branch
      %50 = sbr.rel (0) target = $region29
    $region28: #{context_to_latent_forward.1} parent=1 // pred_region
      %51 = dma.done [#allocation6], 16384
    $region29: #{context_to_latent_forward.1} parent=1 // pred_fallthru
      _
    %v52 = vld [vmem:[%s0] sm:$0xff]
    %v53 = vld [vmem:[%s0 + $0x8] sm:$0xff]
    %v54 = vld [vmem:[%s0 + $0x10] sm:$0xff]
    %v55 = vld [vmem:[%s0 + $0x18] sm:$0xff]
    %v56 = vld [vmem:[#allocation2] sm:$0xff]
    %v57 = vld [vmem:[#allocation2 + $0x8] sm:$0xff]
    %v58 = vld [vmem:[#allocation2 + $0x10] sm:$0xff]
    %v59 = vld [vmem:[#allocation2 + $0x18] sm:$0xff]
    %v60 = vld [vmem:[#allocation2 + $0x20] sm:$0xff]
    %v61 = vld [vmem:[#allocation2 + $0x28] sm:$0xff]
    %v62 = vld [vmem:[#allocation2 + $0x30] sm:$0xff]
    %v63 = vld [vmem:[#allocation2 + $0x38] sm:$0xff]
    %v64 = vld [vmem:[#allocation2 + $0x40] sm:$0xff]
    %v65 = vld [vmem:[#allocation2 + $0x48] sm:$0xff]
    %v66 = vld [vmem:[#allocation2 + $0x50] sm:$0xff]
    %v67 = vld [vmem:[#allocation2 + $0x58] sm:$0xff]
    %v68 = vld [vmem:[#allocation2 + $0x60] sm:$0xff]
    %v69 = vld [vmem:[#allocation2 + $0x68] sm:$0xff]
    %v70 = vld [vmem:[#allocation2 + $0x70] sm:$0xff]
    %v71 = vld [vmem:[#allocation2 + $0x78] sm:$0xff]
    %v72 = vld [vmem:[#allocation2 + $0x80] sm:$0xff]
    %v73 = vld [vmem:[#allocation2 + $0x88] sm:$0xff]
    %v74 = vld [vmem:[#allocation2 + $0x90] sm:$0xff]
    %v75 = vld [vmem:[#allocation2 + $0x98] sm:$0xff]
    %v76 = vld [vmem:[#allocation2 + $0xa0] sm:$0xff]
    %v77 = vld [vmem:[#allocation2 + $0xa8] sm:$0xff]
    %v78 = vld [vmem:[#allocation2 + $0xb0] sm:$0xff]
    %v79 = vld [vmem:[#allocation2 + $0xb8] sm:$0xff]
    %v80 = vld [vmem:[#allocation2 + $0xc0] sm:$0xff]
    %v81 = vld [vmem:[#allocation2 + $0xc8] sm:$0xff]
    %v82 = vld [vmem:[#allocation2 + $0xd0] sm:$0xff]
    %v83 = vld [vmem:[#allocation2 + $0xd8] sm:$0xff]
    %v84 = vld [vmem:[#allocation2 + $0xe0] sm:$0xff]
    %v85 = vld [vmem:[#allocation2 + $0xe8] sm:$0xff]
    %v86 = vld [vmem:[#allocation2 + $0xf0] sm:$0xff]
    %v87 = vld [vmem:[#allocation2 + $0xf8] sm:$0xff]
    %v88 = vld [vmem:[#allocation2 + $0x100] sm:$0xff]
    %v89 = vld [vmem:[#allocation2 + $0x108] sm:$0xff]
    %v90 = vld [vmem:[#allocation2 + $0x110] sm:$0xff]
    %v91 = vld [vmem:[#allocation2 + $0x118] sm:$0xff]
    %v92 = vld [vmem:[#allocation2 + $0x120] sm:$0xff]
    %v93 = vld [vmem:[#allocation2 + $0x128] sm:$0xff]
    %v94 = vld [vmem:[#allocation2 + $0x130] sm:$0xff]
    %v95 = vld [vmem:[#allocation2 + $0x138] sm:$0xff]
    %v96 = vld [vmem:[#allocation2 + $0x140] sm:$0xff]
    %v97 = vld [vmem:[#allocation2 + $0x148] sm:$0xff]
    %v98 = vld [vmem:[#allocation2 + $0x150] sm:$0xff]
    %v99 = vld [vmem:[#allocation2 + $0x158] sm:$0xff]
    %v100 = vld [vmem:[#allocation2 + $0x160] sm:$0xff]
    %v101 = vld [vmem:[#allocation2 + $0x168] sm:$0xff]
    %v102 = vld [vmem:[#allocation2 + $0x170] sm:$0xff]
    %v103 = vld [vmem:[#allocation2 + $0x178] sm:$0xff]
    %v104 = vld [vmem:[#allocation2 + $0x180] sm:$0xff]
    %v105 = vld [vmem:[#allocation2 + $0x188] sm:$0xff]
    %v106 = vld [vmem:[#allocation2 + $0x190] sm:$0xff]
    %v107 = vld [vmem:[#allocation2 + $0x198] sm:$0xff]
    %v108 = vld [vmem:[#allocation2 + $0x1a0] sm:$0xff]
    %v109 = vld [vmem:[#allocation2 + $0x1a8] sm:$0xff]
    %v110 = vld [vmem:[#allocation2 + $0x1b0] sm:$0xff]
    %v111 = vld [vmem:[#allocation2 + $0x1b8] sm:$0xff]
    %v112 = vld [vmem:[#allocation2 + $0x1c0] sm:$0xff]
    %v113 = vld [vmem:[#allocation2 + $0x1c8] sm:$0xff]
    %v114 = vld [vmem:[#allocation2 + $0x1d0] sm:$0xff]
    %v115 = vld [vmem:[#allocation2 + $0x1d8] sm:$0xff]
    %v116 = vld [vmem:[#allocation2 + $0x1e0] sm:$0xff]
    %v117 = vld [vmem:[#allocation2 + $0x1e8] sm:$0xff]
    %v118 = vld [vmem:[#allocation2 + $0x1f0] sm:$0xff]
    %v119 = vld [vmem:[#allocation2 + $0x1f8] sm:$0xff]
    %v120 = vld [vmem:[#allocation2 + $0x200] sm:$0xff]
    %v121 = vld [vmem:[#allocation2 + $0x208] sm:$0xff]
    %v122 = vld [vmem:[#allocation2 + $0x210] sm:$0xff]
    %v123 = vld [vmem:[#allocation2 + $0x218] sm:$0xff]
    %v124 = vld [vmem:[#allocation2 + $0x220] sm:$0xff]
    %v125 = vld [vmem:[#allocation2 + $0x228] sm:$0xff]
    %v126 = vld [vmem:[#allocation2 + $0x230] sm:$0xff]
    %v127 = vld [vmem:[#allocation2 + $0x238] sm:$0xff]
    %v128 = vld [vmem:[#allocation2 + $0x240] sm:$0xff]
    %v129 = vld [vmem:[#allocation2 + $0x248] sm:$0xff]
    %v130 = vld [vmem:[#allocation2 + $0x250] sm:$0xff]
    %v131 = vld [vmem:[#allocation2 + $0x258] sm:$0xff]
    %v132 = vld [vmem:[#allocation2 + $0x260] sm:$0xff]
    %v133 = vld [vmem:[#allocation2 + $0x268] sm:$0xff]
    %v134 = vld [vmem:[#allocation2 + $0x270] sm:$0xff]
    %v135 = vld [vmem:[#allocation2 + $0x278] sm:$0xff]
    %v136 = vld [vmem:[#allocation2 + $0x280] sm:$0xff]
    %v137 = vld [vmem:[#allocation2 + $0x288] sm:$0xff]
    %v138 = vld [vmem:[#allocation2 + $0x290] sm:$0xff]
    %v139 = vld [vmem:[#allocation2 + $0x298] sm:$0xff]
    %v140 = vld [vmem:[#allocation2 + $0x2a0] sm:$0xff]
    %v141 = vld [vmem:[#allocation2 + $0x2a8] sm:$0xff]
    %v142 = vld [vmem:[#allocation2 + $0x2b0] sm:$0xff]
    %v143 = vld [vmem:[#allocation2 + $0x2b8] sm:$0xff]
    %v144 = vld [vmem:[#allocation2 + $0x2c0] sm:$0xff]
    %v145 = vld [vmem:[#allocation2 + $0x2c8] sm:$0xff]
    %v146 = vld [vmem:[#allocation2 + $0x2d0] sm:$0xff]
    %v147 = vld [vmem:[#allocation2 + $0x2d8] sm:$0xff]
    %v148 = vld [vmem:[#allocation2 + $0x2e0] sm:$0xff]
    %v149 = vld [vmem:[#allocation2 + $0x2e8] sm:$0xff]
    %v150 = vld [vmem:[#allocation2 + $0x2f0] sm:$0xff]
    %v151 = vld [vmem:[#allocation2 + $0x2f8] sm:$0xff]
    %v152 = vld [vmem:[#allocation2 + $0x300] sm:$0xff]
    %v153 = vld [vmem:[#allocation2 + $0x308] sm:$0xff]
    %v154 = vld [vmem:[#allocation2 + $0x310] sm:$0xff]
    %v155 = vld [vmem:[#allocation2 + $0x318] sm:$0xff]
    %v156 = vld [vmem:[#allocation2 + $0x320] sm:$0xff]
    %v157 = vld [vmem:[#allocation2 + $0x328] sm:$0xff]
    %v158 = vld [vmem:[#allocation2 + $0x330] sm:$0xff]
    %v159 = vld [vmem:[#allocation2 + $0x338] sm:$0xff]
    %v160 = vld [vmem:[#allocation2 + $0x340] sm:$0xff]
    %v161 = vld [vmem:[#allocation2 + $0x348] sm:$0xff]
    %v162 = vld [vmem:[#allocation2 + $0x350] sm:$0xff]
    %v163 = vld [vmem:[#allocation2 + $0x358] sm:$0xff]
    %v164 = vld [vmem:[#allocation2 + $0x360] sm:$0xff]
    %v165 = vld [vmem:[#allocation2 + $0x368] sm:$0xff]
    %v166 = vld [vmem:[#allocation2 + $0x370] sm:$0xff]
    %v167 = vld [vmem:[#allocation2 + $0x378] sm:$0xff]
    %v168 = vld [vmem:[#allocation2 + $0x380] sm:$0xff]
    %v169 = vld [vmem:[#allocation2 + $0x388] sm:$0xff]
    %v170 = vld [vmem:[#allocation2 + $0x390] sm:$0xff]
    %v171 = vld [vmem:[#allocation2 + $0x398] sm:$0xff]
    %v172 = vld [vmem:[#allocation2 + $0x3a0] sm:$0xff]
    %v173 = vld [vmem:[#allocation2 + $0x3a8] sm:$0xff]
    %v174 = vld [vmem:[#allocation2 + $0x3b0] sm:$0xff]
    %v175 = vld [vmem:[#allocation2 + $0x3b8] sm:$0xff]
    %v176 = vld [vmem:[#allocation2 + $0x3c0] sm:$0xff]
    %v177 = vld [vmem:[#allocation2 + $0x3c8] sm:$0xff]
    %v178 = vld [vmem:[#allocation2 + $0x3d0] sm:$0xff]
    %v179 = vld [vmem:[#allocation2 + $0x3d8] sm:$0xff]
    %v180 = vld [vmem:[#allocation2 + $0x3e0] sm:$0xff]
    %v181 = vld [vmem:[#allocation2 + $0x3e8] sm:$0xff]
    %v182 = vld [vmem:[#allocation2 + $0x3f0] sm:$0xff]
    %v183 = vld [vmem:[#allocation2 + $0x3f8] sm:$0xff]
    %v184 = vunpack.c.l.bf16 %v56
    %v185 = vunpack.c.h.bf16 %v56
    %v186 = vunpack.c.l.bf16 %v57
    %v187 = vunpack.c.h.bf16 %v57
    %v188 = vunpack.c.l.bf16 %v58
    %v189 = vunpack.c.h.bf16 %v58
    %v190 = vunpack.c.l.bf16 %v59
    %v191 = vunpack.c.h.bf16 %v59
    %v192 = vunpack.c.l.bf16 %v60
    %v193 = vunpack.c.h.bf16 %v60
    %v194 = vunpack.c.l.bf16 %v61
    %v195 = vunpack.c.h.bf16 %v61
    %v196 = vunpack.c.l.bf16 %v62
    %v197 = vunpack.c.h.bf16 %v62
    %v198 = vunpack.c.l.bf16 %v63
    %v199 = vunpack.c.h.bf16 %v63
    %v200 = vunpack.c.l.bf16 %v64
    %v201 = vunpack.c.h.bf16 %v64
    %v202 = vunpack.c.l.bf16 %v65
    %v203 = vunpack.c.h.bf16 %v65
    %v204 = vunpack.c.l.bf16 %v66
    %v205 = vunpack.c.h.bf16 %v66
    %v206 = vunpack.c.l.bf16 %v67
    %v207 = vunpack.c.h.bf16 %v67
    %v208 = vunpack.c.l.bf16 %v68
    %v209 = vunpack.c.h.bf16 %v68
    %v210 = vunpack.c.l.bf16 %v69
    %v211 = vunpack.c.h.bf16 %v69
    %v212 = vunpack.c.l.bf16 %v70
    %v213 = vunpack.c.h.bf16 %v70
    %v214 = vunpack.c.l.bf16 %v71
    %v215 = vunpack.c.h.bf16 %v71
    %v216 = vunpack.c.l.bf16 %v72
    %v217 = vunpack.c.h.bf16 %v72
    %v218 = vunpack.c.l.bf16 %v73
    %v219 = vunpack.c.h.bf16 %v73
    %v220 = vunpack.c.l.bf16 %v74
    %v221 = vunpack.c.h.bf16 %v74
    %v222 = vunpack.c.l.bf16 %v75
    %v223 = vunpack.c.h.bf16 %v75
    %v224 = vunpack.c.l.bf16 %v76
    %v225 = vunpack.c.h.bf16 %v76
    %v226 = vunpack.c.l.bf16 %v77
    %v227 = vunpack.c.h.bf16 %v77
    %v228 = vunpack.c.l.bf16 %v78
    %v229 = vunpack.c.h.bf16 %v78
    %v230 = vunpack.c.l.bf16 %v79
    %v231 = vunpack.c.h.bf16 %v79
    %v232 = vunpack.c.l.bf16 %v80
    %v233 = vunpack.c.h.bf16 %v80
    %v234 = vunpack.c.l.bf16 %v81
    %v235 = vunpack.c.h.bf16 %v81
    %v236 = vunpack.c.l.bf16 %v82
    %v237 = vunpack.c.h.bf16 %v82
    %v238 = vunpack.c.l.bf16 %v83
    %v239 = vunpack.c.h.bf16 %v83
    %v240 = vunpack.c.l.bf16 %v84
    %v241 = vunpack.c.h.bf16 %v84
    %v242 = vunpack.c.l.bf16 %v85
    %v243 = vunpack.c.h.bf16 %v85
    %v244 = vunpack.c.l.bf16 %v86
    %v245 = vunpack.c.h.bf16 %v86
    %v246 = vunpack.c.l.bf16 %v87
    %v247 = vunpack.c.h.bf16 %v87
    %v248 = vunpack.c.l.bf16 %v88
    %v249 = vunpack.c.h.bf16 %v88
    %v250 = vunpack.c.l.bf16 %v89
    %v251 = vunpack.c.h.bf16 %v89
    %v252 = vunpack.c.l.bf16 %v90
    %v253 = vunpack.c.h.bf16 %v90
    %v254 = vunpack.c.l.bf16 %v91
    %v255 = vunpack.c.h.bf16 %v91
    %v256 = vunpack.c.l.bf16 %v92
    %v257 = vunpack.c.h.bf16 %v92
    %v258 = vunpack.c.l.bf16 %v93
    %v259 = vunpack.c.h.bf16 %v93
    %v260 = vunpack.c.l.bf16 %v94
    %v261 = vunpack.c.h.bf16 %v94
    %v262 = vunpack.c.l.bf16 %v95
    %v263 = vunpack.c.h.bf16 %v95
    %v264 = vunpack.c.l.bf16 %v96
    %v265 = vunpack.c.h.bf16 %v96
    %v266 = vunpack.c.l.bf16 %v97
    %v267 = vunpack.c.h.bf16 %v97
    %v268 = vunpack.c.l.bf16 %v98
    %v269 = vunpack.c.h.bf16 %v98
    %v270 = vunpack.c.l.bf16 %v99
    %v271 = vunpack.c.h.bf16 %v99
    %v272 = vunpack.c.l.bf16 %v100
    %v273 = vunpack.c.h.bf16 %v100
    %v274 = vunpack.c.l.bf16 %v101
    %v275 = vunpack.c.h.bf16 %v101
    %v276 = vunpack.c.l.bf16 %v102
    %v277 = vunpack.c.h.bf16 %v102
    %v278 = vunpack.c.l.bf16 %v103
    %v279 = vunpack.c.h.bf16 %v103
    %v280 = vunpack.c.l.bf16 %v104
    %v281 = vunpack.c.h.bf16 %v104
    %v282 = vunpack.c.l.bf16 %v105
    %v283 = vunpack.c.h.bf16 %v105
    %v284 = vunpack.c.l.bf16 %v106
    %v285 = vunpack.c.h.bf16 %v106
    %v286 = vunpack.c.l.bf16 %v107
    %v287 = vunpack.c.h.bf16 %v107
    %v288 = vunpack.c.l.bf16 %v108
    %v289 = vunpack.c.h.bf16 %v108
    %v290 = vunpack.c.l.bf16 %v109
    %v291 = vunpack.c.h.bf16 %v109
    %v292 = vunpack.c.l.bf16 %v110
    %v293 = vunpack.c.h.bf16 %v110
    %v294 = vunpack.c.l.bf16 %v111
    %v295 = vunpack.c.h.bf16 %v111
    %v296 = vunpack.c.l.bf16 %v112
    %v297 = vunpack.c.h.bf16 %v112
    %v298 = vunpack.c.l.bf16 %v113
    %v299 = vunpack.c.h.bf16 %v113
    %v300 = vunpack.c.l.bf16 %v114
    %v301 = vunpack.c.h.bf16 %v114
    %v302 = vunpack.c.l.bf16 %v115
    %v303 = vunpack.c.h.bf16 %v115
    %v304 = vunpack.c.l.bf16 %v116
    %v305 = vunpack.c.h.bf16 %v116
    %v306 = vunpack.c.l.bf16 %v117
    %v307 = vunpack.c.h.bf16 %v117
    %v308 = vunpack.c.l.bf16 %v118
    %v309 = vunpack.c.h.bf16 %v118
    %v310 = vunpack.c.l.bf16 %v119
    %v311 = vunpack.c.h.bf16 %v119
    %v312 = vunpack.c.l.bf16 %v120
    %v313 = vunpack.c.h.bf16 %v120
    %v314 = vunpack.c.l.bf16 %v121
    %v315 = vunpack.c.h.bf16 %v121
    %v316 = vunpack.c.l.bf16 %v122
    %v317 = vunpack.c.h.bf16 %v122
    %v318 = vunpack.c.l.bf16 %v123
    %v319 = vunpack.c.h.bf16 %v123
    %v320 = vunpack.c.l.bf16 %v124
    %v321 = vunpack.c.h.bf16 %v124
    %v322 = vunpack.c.l.bf16 %v125
    %v323 = vunpack.c.h.bf16 %v125
    %v324 = vunpack.c.l.bf16 %v126
    %v325 = vunpack.c.h.bf16 %v126
    %v326 = vunpack.c.l.bf16 %v127
    %v327 = vunpack.c.h.bf16 %v127
    %v328 = vunpack.c.l.bf16 %v128
    %v329 = vunpack.c.h.bf16 %v128
    %v330 = vunpack.c.l.bf16 %v129
    %v331 = vunpack.c.h.bf16 %v129
    %v332 = vunpack.c.l.bf16 %v130
    %v333 = vunpack.c.h.bf16 %v130
    %v334 = vunpack.c.l.bf16 %v131
    %v335 = vunpack.c.h.bf16 %v131
    %v336 = vunpack.c.l.bf16 %v132
    %v337 = vunpack.c.h.bf16 %v132
    %v338 = vunpack.c.l.bf16 %v133
    %v339 = vunpack.c.h.bf16 %v133
    %v340 = vunpack.c.l.bf16 %v134
    %v341 = vunpack.c.h.bf16 %v134
    %v342 = vunpack.c.l.bf16 %v135
    %v343 = vunpack.c.h.bf16 %v135
    %v344 = vunpack.c.l.bf16 %v136
    %v345 = vunpack.c.h.bf16 %v136
    %v346 = vunpack.c.l.bf16 %v137
    %v347 = vunpack.c.h.bf16 %v137
    %v348 = vunpack.c.l.bf16 %v138
    %v349 = vunpack.c.h.bf16 %v138
    %v350 = vunpack.c.l.bf16 %v139
    %v351 = vunpack.c.h.bf16 %v139
    %v352 = vunpack.c.l.bf16 %v140
    %v353 = vunpack.c.h.bf16 %v140
    %v354 = vunpack.c.l.bf16 %v141
    %v355 = vunpack.c.h.bf16 %v141
    %v356 = vunpack.c.l.bf16 %v142
    %v357 = vunpack.c.h.bf16 %v142
    %v358 = vunpack.c.l.bf16 %v143
    %v359 = vunpack.c.h.bf16 %v143
    %v360 = vunpack.c.l.bf16 %v144
    %v361 = vunpack.c.h.bf16 %v144
    %v362 = vunpack.c.l.bf16 %v145
    %v363 = vunpack.c.h.bf16 %v145
    %v364 = vunpack.c.l.bf16 %v146
    %v365 = vunpack.c.h.bf16 %v146
    %v366 = vunpack.c.l.bf16 %v147
    %v367 = vunpack.c.h.bf16 %v147
    %v368 = vunpack.c.l.bf16 %v148
    %v369 = vunpack.c.h.bf16 %v148
    %v370 = vunpack.c.l.bf16 %v149
    %v371 = vunpack.c.h.bf16 %v149
    %v372 = vunpack.c.l.bf16 %v150
    %v373 = vunpack.c.h.bf16 %v150
    %v374 = vunpack.c.l.bf16 %v151
    %v375 = vunpack.c.h.bf16 %v151
    %v376 = vunpack.c.l.bf16 %v152
    %v377 = vunpack.c.h.bf16 %v152
    %v378 = vunpack.c.l.bf16 %v153
    %v379 = vunpack.c.h.bf16 %v153
    %v380 = vunpack.c.l.bf16 %v154
    %v381 = vunpack.c.h.bf16 %v154
    %v382 = vunpack.c.l.bf16 %v155
    %v383 = vunpack.c.h.bf16 %v155
    %v384 = vunpack.c.l.bf16 %v156
    %v385 = vunpack.c.h.bf16 %v156
    %v386 = vunpack.c.l.bf16 %v157
    %v387 = vunpack.c.h.bf16 %v157
    %v388 = vunpack.c.l.bf16 %v158
    %v389 = vunpack.c.h.bf16 %v158
    %v390 = vunpack.c.l.bf16 %v159
    %v391 = vunpack.c.h.bf16 %v159
    %v392 = vunpack.c.l.bf16 %v160
    %v393 = vunpack.c.h.bf16 %v160
    %v394 = vunpack.c.l.bf16 %v161
    %v395 = vunpack.c.h.bf16 %v161
    %v396 = vunpack.c.l.bf16 %v162
    %v397 = vunpack.c.h.bf16 %v162
    %v398 = vunpack.c.l.bf16 %v163
    %v399 = vunpack.c.h.bf16 %v163
    %v400 = vunpack.c.l.bf16 %v164
    %v401 = vunpack.c.h.bf16 %v164
    %v402 = vunpack.c.l.bf16 %v165
    %v403 = vunpack.c.h.bf16 %v165
    %v404 = vunpack.c.l.bf16 %v166
    %v405 = vunpack.c.h.bf16 %v166
    %v406 = vunpack.c.l.bf16 %v167
    %v407 = vunpack.c.h.bf16 %v167
    %v408 = vunpack.c.l.bf16 %v168
    %v409 = vunpack.c.h.bf16 %v168
    %v410 = vunpack.c.l.bf16 %v169
    %v411 = vunpack.c.h.bf16 %v169
    %v412 = vunpack.c.l.bf16 %v170
    %v413 = vunpack.c.h.bf16 %v170
    %v414 = vunpack.c.l.bf16 %v171
    %v415 = vunpack.c.h.bf16 %v171
    %v416 = vunpack.c.l.bf16 %v172
    %v417 = vunpack.c.h.bf16 %v172
    %v418 = vunpack.c.l.bf16 %v173
    %v419 = vunpack.c.h.bf16 %v173
    %v420 = vunpack.c.l.bf16 %v174
    %v421 = vunpack.c.h.bf16 %v174
    %v422 = vunpack.c.l.bf16 %v175
    %v423 = vunpack.c.h.bf16 %v175
    %v424 = vunpack.c.l.bf16 %v176
    %v425 = vunpack.c.h.bf16 %v176
    %v426 = vunpack.c.l.bf16 %v177
    %v427 = vunpack.c.h.bf16 %v177
    %v428 = vunpack.c.l.bf16 %v178
    %v429 = vunpack.c.h.bf16 %v178
    %v430 = vunpack.c.l.bf16 %v179
    %v431 = vunpack.c.h.bf16 %v179
    %v432 = vunpack.c.l.bf16 %v180
    %v433 = vunpack.c.h.bf16 %v180
    %v434 = vunpack.c.l.bf16 %v181
    %v435 = vunpack.c.h.bf16 %v181
    %v436 = vunpack.c.l.bf16 %v182
    %v437 = vunpack.c.h.bf16 %v182
    %v438 = vunpack.c.l.bf16 %v183
    %v439 = vunpack.c.h.bf16 %v183
    %v440 = vld [vmem:[%s2] sm:$0xf]
    %v442 = vlaneseq
    %v443 = vshrl.u32 %v442, 7
    %v444 = vsub.s32 0, %v443
    %v445 = vrot.slane %v440, %v444
    %v446 = vlaneseq
    %v447 = vshrl.u32 %v446, 7
    %v448 = vsub.s32 1, %v447
    %v449 = vrot.slane %v440, %v448
    %v450 = vlaneseq
    %v451 = vshrl.u32 %v450, 7
    %v452 = vsub.s32 2, %v451
    %v453 = vrot.slane %v440, %v452
    %v454 = vlaneseq
    %v455 = vshrl.u32 %v454, 7
    %v456 = vsub.s32 3, %v455
    %v457 = vrot.slane %v440, %v456
    %462 = vmatprep.subr.mxu0 %v185
    %463 = vmatpush1.msra.mxu0 %v184
    %464 = vmatprep.subr.mxu0 %v189
    %465 = vmatpush1.msra.mxu0 %v188
    %466 = vmatprep.subr.mxu0 %v193
    %467 = vmatpush1.msra.mxu0 %v192
    %468 = vmatprep.subr.mxu0 %v197
    %469 = vmatpush1.msra.mxu0 %v196
    %470 = vmatprep.subr.mxu0 %v201
    %471 = vmatpush1.msra.mxu0 %v200
    %472 = vmatprep.subr.mxu0 %v205
    %473 = vmatpush1.msra.mxu0 %v204
    %474 = vmatprep.subr.mxu0 %v209
    %475 = vmatpush1.msra.mxu0 %v208
    %476 = vmatprep.subr.mxu0 %v213
    %477 = vmatpush1.msra.mxu0 %v212
    %478 = vmatprep.subr.mxu0 %v217
    %479 = vmatpush1.msra.mxu0 %v216
    %480 = vmatprep.subr.mxu0 %v221
    %481 = vmatpush1.msra.mxu0 %v220
    %482 = vmatprep.subr.mxu0 %v225
    %483 = vmatpush1.msra.mxu0 %v224
    %484 = vmatprep.subr.mxu0 %v229
    %485 = vmatpush1.msra.mxu0 %v228
    %486 = vmatprep.subr.mxu0 %v233
    %487 = vmatpush1.msra.mxu0 %v232
    %488 = vmatprep.subr.mxu0 %v237
    %489 = vmatpush1.msra.mxu0 %v236
    %490 = vmatprep.subr.mxu0 %v241
    %491 = vmatpush1.msra.mxu0 %v240
    %492 = vmatprep.subr.mxu0 %v245
    %493 = vmatpush1.msra.mxu0 %v244
    %494 = vmatprep.subr.mxu0 %v249
    %495 = vmatpush1.msra.mxu0 %v248
    %496 = vmatprep.subr.mxu0 %v253
    %497 = vmatpush1.msra.mxu0 %v252
    %498 = vmatprep.subr.mxu0 %v257
    %499 = vmatpush1.msra.mxu0 %v256
    %500 = vmatprep.subr.mxu0 %v261
    %501 = vmatpush1.msra.mxu0 %v260
    %502 = vmatprep.subr.mxu0 %v265
    %503 = vmatpush1.msra.mxu0 %v264
    %504 = vmatprep.subr.mxu0 %v269
    %505 = vmatpush1.msra.mxu0 %v268
    %506 = vmatprep.subr.mxu0 %v273
    %507 = vmatpush1.msra.mxu0 %v272
    %508 = vmatprep.subr.mxu0 %v277
    %509 = vmatpush1.msra.mxu0 %v276
    %510 = vmatprep.subr.mxu0 %v281
    %511 = vmatpush1.msra.mxu0 %v280
    %512 = vmatprep.subr.mxu0 %v285
    %513 = vmatpush1.msra.mxu0 %v284
    %514 = vmatprep.subr.mxu0 %v289
    %515 = vmatpush1.msra.mxu0 %v288
    %516 = vmatprep.subr.mxu0 %v293
    %517 = vmatpush1.msra.mxu0 %v292
    %518 = vmatprep.subr.mxu0 %v297
    %519 = vmatpush1.msra.mxu0 %v296
    %520 = vmatprep.subr.mxu0 %v301
    %521 = vmatpush1.msra.mxu0 %v300
    %522 = vmatprep.subr.mxu0 %v305
    %523 = vmatpush1.msra.mxu0 %v304
    %524 = vmatprep.subr.mxu0 %v309
    %525 = vmatpush1.msra.mxu0 %v308
    %526 = vmatprep.mubr.f32.mxu0 %v53
    %527 = vmatmul.mubr.f32.gmra.mrb[0].mxu0 %v52
    %v528 = vpop.f32.mrb[0].mxu0
    %v529 = vadd.f32 %v445, %v528
    %v530 = vpop.f32.mrb[0].mxu0
    %v531 = vadd.f32 %v449, %v530
    %532 = vdwg.mxu0
    %533 = vmatprep.subr.mxu0 %v313
    %534 = vmatpush1.msra.mxu0 %v312
    %535 = vmatprep.subr.mxu0 %v317
    %536 = vmatpush1.msra.mxu0 %v316
    %537 = vmatprep.subr.mxu0 %v321
    %538 = vmatpush1.msra.mxu0 %v320
    %539 = vmatprep.subr.mxu0 %v325
    %540 = vmatpush1.msra.mxu0 %v324
    %541 = vmatprep.subr.mxu0 %v329
    %542 = vmatpush1.msra.mxu0 %v328
    %543 = vmatprep.subr.mxu0 %v333
    %544 = vmatpush1.msra.mxu0 %v332
    %545 = vmatprep.subr.mxu0 %v337
    %546 = vmatpush1.msra.mxu0 %v336
    %547 = vmatprep.subr.mxu0 %v341
    %548 = vmatpush1.msra.mxu0 %v340
    %549 = vmatprep.subr.mxu0 %v345
    %550 = vmatpush1.msra.mxu0 %v344
    %551 = vmatprep.subr.mxu0 %v349
    %552 = vmatpush1.msra.mxu0 %v348
    %553 = vmatprep.subr.mxu0 %v353
    %554 = vmatpush1.msra.mxu0 %v352
    %555 = vmatprep.subr.mxu0 %v357
    %556 = vmatpush1.msra.mxu0 %v356
    %557 = vmatprep.subr.mxu0 %v361
    %558 = vmatpush1.msra.mxu0 %v360
    %559 = vmatprep.subr.mxu0 %v365
    %560 = vmatpush1.msra.mxu0 %v364
    %561 = vmatprep.subr.mxu0 %v369
    %562 = vmatpush1.msra.mxu0 %v368
    %563 = vmatprep.subr.mxu0 %v373
    %564 = vmatpush1.msra.mxu0 %v372
    %565 = vmatprep.subr.mxu0 %v377
    %566 = vmatpush1.msra.mxu0 %v376
    %567 = vmatprep.subr.mxu0 %v381
    %568 = vmatpush1.msra.mxu0 %v380
    %569 = vmatprep.subr.mxu0 %v385
    %570 = vmatpush1.msra.mxu0 %v384
    %571 = vmatprep.subr.mxu0 %v389
    %572 = vmatpush1.msra.mxu0 %v388
    %573 = vmatprep.subr.mxu0 %v393
    %574 = vmatpush1.msra.mxu0 %v392
    %575 = vmatprep.subr.mxu0 %v397
    %576 = vmatpush1.msra.mxu0 %v396
    %577 = vmatprep.subr.mxu0 %v401
    %578 = vmatpush1.msra.mxu0 %v400
    %579 = vmatprep.subr.mxu0 %v405
    %580 = vmatpush1.msra.mxu0 %v404
    %581 = vmatprep.subr.mxu0 %v409
    %582 = vmatpush1.msra.mxu0 %v408
    %583 = vmatprep.subr.mxu0 %v413
    %584 = vmatpush1.msra.mxu0 %v412
    %585 = vmatprep.subr.mxu0 %v417
    %586 = vmatpush1.msra.mxu0 %v416
    %587 = vmatprep.subr.mxu0 %v421
    %588 = vmatpush1.msra.mxu0 %v420
    %589 = vmatprep.subr.mxu0 %v425
    %590 = vmatpush1.msra.mxu0 %v424
    %591 = vmatprep.subr.mxu0 %v429
    %592 = vmatpush1.msra.mxu0 %v428
    %593 = vmatprep.subr.mxu0 %v433
    %594 = vmatpush1.msra.mxu0 %v432
    %595 = vmatprep.subr.mxu0 %v437
    %596 = vmatpush1.msra.mxu0 %v436
    %597 = vmatprep.mubr.f32.mxu0 %v55
    %598 = vmatmul.mubr.f32.gmra.mrb[0].mxu0 %v54
    %v599 = vpop.f32.mrb[0].mxu0
    %v600 = vadd.f32 %v529, %v599
    %v601 = vpop.f32.mrb[0].mxu0
    %v602 = vadd.f32 %v531, %v601
    %603 = vdwg.mxu0
    %604 = vmatprep.subr.mxu0 %v187
    %605 = vmatpush1.msra.mxu0 %v186
    %606 = vmatprep.subr.mxu0 %v191
    %607 = vmatpush1.msra.mxu0 %v190
    %608 = vmatprep.subr.mxu0 %v195
    %609 = vmatpush1.msra.mxu0 %v194
    %610 = vmatprep.subr.mxu0 %v199
    %611 = vmatpush1.msra.mxu0 %v198
    %612 = vmatprep.subr.mxu0 %v203
    %613 = vmatpush1.msra.mxu0 %v202
    %614 = vmatprep.subr.mxu0 %v207
    %615 = vmatpush1.msra.mxu0 %v206
    %616 = vmatprep.subr.mxu0 %v211
    %617 = vmatpush1.msra.mxu0 %v210
    %618 = vmatprep.subr.mxu0 %v215
    %619 = vmatpush1.msra.mxu0 %v214
    %620 = vmatprep.subr.mxu0 %v219
    %621 = vmatpush1.msra.mxu0 %v218
    %622 = vmatprep.subr.mxu0 %v223
    %623 = vmatpush1.msra.mxu0 %v222
    %624 = vmatprep.subr.mxu0 %v227
    %625 = vmatpush1.msra.mxu0 %v226
    %626 = vmatprep.subr.mxu0 %v231
    %627 = vmatpush1.msra.mxu0 %v230
    %628 = vmatprep.subr.mxu0 %v235
    %629 = vmatpush1.msra.mxu0 %v234
    %630 = vmatprep.subr.mxu0 %v239
    %631 = vmatpush1.msra.mxu0 %v238
    %632 = vmatprep.subr.mxu0 %v243
    %633 = vmatpush1.msra.mxu0 %v242
    %634 = vmatprep.subr.mxu0 %v247
    %635 = vmatpush1.msra.mxu0 %v246
    %636 = vmatprep.subr.mxu0 %v251
    %637 = vmatpush1.msra.mxu0 %v250
    %638 = vmatprep.subr.mxu0 %v255
    %639 = vmatpush1.msra.mxu0 %v254
    %640 = vmatprep.subr.mxu0 %v259
    %641 = vmatpush1.msra.mxu0 %v258
    %642 = vmatprep.subr.mxu0 %v263
    %643 = vmatpush1.msra.mxu0 %v262
    %644 = vmatprep.subr.mxu0 %v267
    %645 = vmatpush1.msra.mxu0 %v266
    %646 = vmatprep.subr.mxu0 %v271
    %647 = vmatpush1.msra.mxu0 %v270
    %648 = vmatprep.subr.mxu0 %v275
    %649 = vmatpush1.msra.mxu0 %v274
    %650 = vmatprep.subr.mxu0 %v279
    %651 = vmatpush1.msra.mxu0 %v278
    %652 = vmatprep.subr.mxu0 %v283
    %653 = vmatpush1.msra.mxu0 %v282
    %654 = vmatprep.subr.mxu0 %v287
    %655 = vmatpush1.msra.mxu0 %v286
    %656 = vmatprep.subr.mxu0 %v291
    %657 = vmatpush1.msra.mxu0 %v290
    %658 = vmatprep.subr.mxu0 %v295
    %659 = vmatpush1.msra.mxu0 %v294
    %660 = vmatprep.subr.mxu0 %v299
    %661 = vmatpush1.msra.mxu0 %v298
    %662 = vmatprep.subr.mxu0 %v303
    %663 = vmatpush1.msra.mxu0 %v302
    %664 = vmatprep.subr.mxu0 %v307
    %665 = vmatpush1.msra.mxu0 %v306
    %666 = vmatprep.subr.mxu0 %v311
    %667 = vmatpush1.msra.mxu0 %v310
    %668 = vmatprep.mubr.f32.mxu0 %v53
    %669 = vmatmul.mubr.f32.gmra.mrb[0].mxu0 %v52
    %v670 = vpop.f32.mrb[0].mxu0
    %v671 = vadd.f32 %v453, %v670
    %v672 = vpop.f32.mrb[0].mxu0
    %v673 = vadd.f32 %v457, %v672
    %674 = vdwg.mxu0
    %675 = vmatprep.subr.mxu0 %v315
    %676 = vmatpush1.msra.mxu0 %v314
    %677 = vmatprep.subr.mxu0 %v319
    %678 = vmatpush1.msra.mxu0 %v318
    %679 = vmatprep.subr.mxu0 %v323
    %680 = vmatpush1.msra.mxu0 %v322
    %681 = vmatprep.subr.mxu0 %v327
    %682 = vmatpush1.msra.mxu0 %v326
    %683 = vmatprep.subr.mxu0 %v331
    %684 = vmatpush1.msra.mxu0 %v330
    %685 = vmatprep.subr.mxu0 %v335
    %686 = vmatpush1.msra.mxu0 %v334
    %687 = vmatprep.subr.mxu0 %v339
    %688 = vmatpush1.msra.mxu0 %v338
    %689 = vmatprep.subr.mxu0 %v343
    %690 = vmatpush1.msra.mxu0 %v342
    %691 = vmatprep.subr.mxu0 %v347
    %692 = vmatpush1.msra.mxu0 %v346
    %693 = vmatprep.subr.mxu0 %v351
    %694 = vmatpush1.msra.mxu0 %v350
    %695 = vmatprep.subr.mxu0 %v355
    %696 = vmatpush1.msra.mxu0 %v354
    %697 = vmatprep.subr.mxu0 %v359
    %698 = vmatpush1.msra.mxu0 %v358
    %699 = vmatprep.subr.mxu0 %v363
    %700 = vmatpush1.msra.mxu0 %v362
    %701 = vmatprep.subr.mxu0 %v367
    %702 = vmatpush1.msra.mxu0 %v366
    %703 = vmatprep.subr.mxu0 %v371
    %704 = vmatpush1.msra.mxu0 %v370
    %705 = vmatprep.subr.mxu0 %v375
    %706 = vmatpush1.msra.mxu0 %v374
    %707 = vmatprep.subr.mxu0 %v379
    %708 = vmatpush1.msra.mxu0 %v378
    %709 = vmatprep.subr.mxu0 %v383
    %710 = vmatpush1.msra.mxu0 %v382
    %711 = vmatprep.subr.mxu0 %v387
    %712 = vmatpush1.msra.mxu0 %v386
    %713 = vmatprep.subr.mxu0 %v391
    %714 = vmatpush1.msra.mxu0 %v390
    %715 = vmatprep.subr.mxu0 %v395
    %716 = vmatpush1.msra.mxu0 %v394
    %717 = vmatprep.subr.mxu0 %v399
    %718 = vmatpush1.msra.mxu0 %v398
    %719 = vmatprep.subr.mxu0 %v403
    %720 = vmatpush1.msra.mxu0 %v402
    %721 = vmatprep.subr.mxu0 %v407
    %722 = vmatpush1.msra.mxu0 %v406
    %723 = vmatprep.subr.mxu0 %v411
    %724 = vmatpush1.msra.mxu0 %v410
    %725 = vmatprep.subr.mxu0 %v415
    %726 = vmatpush1.msra.mxu0 %v414
    %727 = vmatprep.subr.mxu0 %v419
    %728 = vmatpush1.msra.mxu0 %v418
    %729 = vmatprep.subr.mxu0 %v423
    %730 = vmatpush1.msra.mxu0 %v422
    %731 = vmatprep.subr.mxu0 %v427
    %732 = vmatpush1.msra.mxu0 %v426
    %733 = vmatprep.subr.mxu0 %v431
    %734 = vmatpush1.msra.mxu0 %v430
    %735 = vmatprep.subr.mxu0 %v435
    %736 = vmatpush1.msra.mxu0 %v434
    %737 = vmatprep.subr.mxu0 %v439
    %738 = vmatpush1.msra.mxu0 %v438
    %739 = vmatprep.mubr.f32.mxu0 %v55
    %740 = vmatmul.mubr.f32.gmra.mrb[0].mxu0 %v54
    %v741 = vpop.f32.mrb[0].mxu0
    %v742 = vadd.f32 %v671, %v741
    %v743 = vpop.f32.mrb[0].mxu0
    %v744 = vadd.f32 %v673, %v743
    %745 = vdwg.mxu0
    %746 = vst [vmem:[#allocation7] sm:$0xff] %v600
    %747 = vst [vmem:[#allocation7 + $0x8] sm:$0xff] %v602
    %748 = vst [vmem:[#allocation7 + $0x10] sm:$0xff] %v742
    %749 = vst [vmem:[#allocation7 + $0x18] sm:$0xff] %v744
    %v750 = vld [vmem:[#allocation5] sm:$0xff]
    %v751 = vld [vmem:[#allocation5 + $0x8] sm:$0xff]
    %v752 = vld [vmem:[#allocation5 + $0x10] sm:$0xff]
    %v753 = vld [vmem:[#allocation5 + $0x18] sm:$0xff]
    %v754 = vld [vmem:[#allocation5 + $0x20] sm:$0xff]
    %v755 = vld [vmem:[#allocation5 + $0x28] sm:$0xff]
    %v756 = vld [vmem:[#allocation5 + $0x30] sm:$0xff]
    %v757 = vld [vmem:[#allocation5 + $0x38] sm:$0xff]
    %v758 = vld [vmem:[#allocation5 + $0x40] sm:$0xff]
    %v759 = vld [vmem:[#allocation5 + $0x48] sm:$0xff]
    %v760 = vld [vmem:[#allocation5 + $0x50] sm:$0xff]
    %v761 = vld [vmem:[#allocation5 + $0x58] sm:$0xff]
    %v762 = vld [vmem:[#allocation5 + $0x60] sm:$0xff]
    %v763 = vld [vmem:[#allocation5 + $0x68] sm:$0xff]
    %v764 = vld [vmem:[#allocation5 + $0x70] sm:$0xff]
    %v765 = vld [vmem:[#allocation5 + $0x78] sm:$0xff]
    %v766 = vld [vmem:[#allocation5 + $0x80] sm:$0xff]
    %v767 = vld [vmem:[#allocation5 + $0x88] sm:$0xff]
    %v768 = vld [vmem:[#allocation5 + $0x90] sm:$0xff]
    %v769 = vld [vmem:[#allocation5 + $0x98] sm:$0xff]
    %v770 = vld [vmem:[#allocation5 + $0xa0] sm:$0xff]
    %v771 = vld [vmem:[#allocation5 + $0xa8] sm:$0xff]
    %v772 = vld [vmem:[#allocation5 + $0xb0] sm:$0xff]
    %v773 = vld [vmem:[#allocation5 + $0xb8] sm:$0xff]
    %v774 = vld [vmem:[#allocation5 + $0xc0] sm:$0xff]
    %v775 = vld [vmem:[#allocation5 + $0xc8] sm:$0xff]
    %v776 = vld [vmem:[#allocation5 + $0xd0] sm:$0xff]
    %v777 = vld [vmem:[#allocation5 + $0xd8] sm:$0xff]
    %v778 = vld [vmem:[#allocation5 + $0xe0] sm:$0xff]
    %v779 = vld [vmem:[#allocation5 + $0xe8] sm:$0xff]
    %v780 = vld [vmem:[#allocation5 + $0xf0] sm:$0xff]
    %v781 = vld [vmem:[#allocation5 + $0xf8] sm:$0xff]
    %v782 = vld [vmem:[#allocation5 + $0x100] sm:$0xff]
    %v783 = vld [vmem:[#allocation5 + $0x108] sm:$0xff]
    %v784 = vld [vmem:[#allocation5 + $0x110] sm:$0xff]
    %v785 = vld [vmem:[#allocation5 + $0x118] sm:$0xff]
    %v786 = vld [vmem:[#allocation5 + $0x120] sm:$0xff]
    %v787 = vld [vmem:[#allocation5 + $0x128] sm:$0xff]
    %v788 = vld [vmem:[#allocation5 + $0x130] sm:$0xff]
    %v789 = vld [vmem:[#allocation5 + $0x138] sm:$0xff]
    %v790 = vld [vmem:[#allocation5 + $0x140] sm:$0xff]
    %v791 = vld [vmem:[#allocation5 + $0x148] sm:$0xff]
    %v792 = vld [vmem:[#allocation5 + $0x150] sm:$0xff]
    %v793 = vld [vmem:[#allocation5 + $0x158] sm:$0xff]
    %v794 = vld [vmem:[#allocation5 + $0x160] sm:$0xff]
    %v795 = vld [vmem:[#allocation5 + $0x168] sm:$0xff]
    %v796 = vld [vmem:[#allocation5 + $0x170] sm:$0xff]
    %v797 = vld [vmem:[#allocation5 + $0x178] sm:$0xff]
    %v798 = vld [vmem:[#allocation5 + $0x180] sm:$0xff]
    %v799 = vld [vmem:[#allocation5 + $0x188] sm:$0xff]
    %v800 = vld [vmem:[#allocation5 + $0x190] sm:$0xff]
    %v801 = vld [vmem:[#allocation5 + $0x198] sm:$0xff]
    %v802 = vld [vmem:[#allocation5 + $0x1a0] sm:$0xff]
    %v803 = vld [vmem:[#allocation5 + $0x1a8] sm:$0xff]
    %v804 = vld [vmem:[#allocation5 + $0x1b0] sm:$0xff]
    %v805 = vld [vmem:[#allocation5 + $0x1b8] sm:$0xff]
    %v806 = vld [vmem:[#allocation5 + $0x1c0] sm:$0xff]
    %v807 = vld [vmem:[#allocation5 + $0x1c8] sm:$0xff]
    %v808 = vld [vmem:[#allocation5 + $0x1d0] sm:$0xff]
    %v809 = vld [vmem:[#allocation5 + $0x1d8] sm:$0xff]
    %v810 = vld [vmem:[#allocation5 + $0x1e0] sm:$0xff]
    %v811 = vld [vmem:[#allocation5 + $0x1e8] sm:$0xff]
    %v812 = vld [vmem:[#allocation5 + $0x1f0] sm:$0xff]
    %v813 = vld [vmem:[#allocation5 + $0x1f8] sm:$0xff]
    %v814 = vld [vmem:[#allocation5 + $0x200] sm:$0xff]
    %v815 = vld [vmem:[#allocation5 + $0x208] sm:$0xff]
    %v816 = vld [vmem:[#allocation5 + $0x210] sm:$0xff]
    %v817 = vld [vmem:[#allocation5 + $0x218] sm:$0xff]
    %v818 = vld [vmem:[#allocation5 + $0x220] sm:$0xff]
    %v819 = vld [vmem:[#allocation5 + $0x228] sm:$0xff]
    %v820 = vld [vmem:[#allocation5 + $0x230] sm:$0xff]
    %v821 = vld [vmem:[#allocation5 + $0x238] sm:$0xff]
    %v822 = vld [vmem:[#allocation5 + $0x240] sm:$0xff]
    %v823 = vld [vmem:[#allocation5 + $0x248] sm:$0xff]
    %v824 = vld [vmem:[#allocation5 + $0x250] sm:$0xff]
    %v825 = vld [vmem:[#allocation5 + $0x258] sm:$0xff]
    %v826 = vld [vmem:[#allocation5 + $0x260] sm:$0xff]
    %v827 = vld [vmem:[#allocation5 + $0x268] sm:$0xff]
    %v828 = vld [vmem:[#allocation5 + $0x270] sm:$0xff]
    %v829 = vld [vmem:[#allocation5 + $0x278] sm:$0xff]
    %v830 = vld [vmem:[#allocation5 + $0x280] sm:$0xff]
    %v831 = vld [vmem:[#allocation5 + $0x288] sm:$0xff]
    %v832 = vld [vmem:[#allocation5 + $0x290] sm:$0xff]
    %v833 = vld [vmem:[#allocation5 + $0x298] sm:$0xff]
    %v834 = vld [vmem:[#allocation5 + $0x2a0] sm:$0xff]
    %v835 = vld [vmem:[#allocation5 + $0x2a8] sm:$0xff]
    %v836 = vld [vmem:[#allocation5 + $0x2b0] sm:$0xff]
    %v837 = vld [vmem:[#allocation5 + $0x2b8] sm:$0xff]
    %v838 = vld [vmem:[#allocation5 + $0x2c0] sm:$0xff]
    %v839 = vld [vmem:[#allocation5 + $0x2c8] sm:$0xff]
    %v840 = vld [vmem:[#allocation5 + $0x2d0] sm:$0xff]
    %v841 = vld [vmem:[#allocation5 + $0x2d8] sm:$0xff]
    %v842 = vld [vmem:[#allocation5 + $0x2e0] sm:$0xff]
    %v843 = vld [vmem:[#allocation5 + $0x2e8] sm:$0xff]
    %v844 = vld [vmem:[#allocation5 + $0x2f0] sm:$0xff]
    %v845 = vld [vmem:[#allocation5 + $0x2f8] sm:$0xff]
    %v846 = vld [vmem:[#allocation5 + $0x300] sm:$0xff]
    %v847 = vld [vmem:[#allocation5 + $0x308] sm:$0xff]
    %v848 = vld [vmem:[#allocation5 + $0x310] sm:$0xff]
    %v849 = vld [vmem:[#allocation5 + $0x318] sm:$0xff]
    %v850 = vld [vmem:[#allocation5 + $0x320] sm:$0xff]
    %v851 = vld [vmem:[#allocation5 + $0x328] sm:$0xff]
    %v852 = vld [vmem:[#allocation5 + $0x330] sm:$0xff]
    %v853 = vld [vmem:[#allocation5 + $0x338] sm:$0xff]
    %v854 = vld [vmem:[#allocation5 + $0x340] sm:$0xff]
    %v855 = vld [vmem:[#allocation5 + $0x348] sm:$0xff]
    %v856 = vld [vmem:[#allocation5 + $0x350] sm:$0xff]
    %v857 = vld [vmem:[#allocation5 + $0x358] sm:$0xff]
    %v858 = vld [vmem:[#allocation5 + $0x360] sm:$0xff]
    %v859 = vld [vmem:[#allocation5 + $0x368] sm:$0xff]
    %v860 = vld [vmem:[#allocation5 + $0x370] sm:$0xff]
    %v861 = vld [vmem:[#allocation5 + $0x378] sm:$0xff]
    %v862 = vld [vmem:[#allocation5 + $0x380] sm:$0xff]
    %v863 = vld [vmem:[#allocation5 + $0x388] sm:$0xff]
    %v864 = vld [vmem:[#allocation5 + $0x390] sm:$0xff]
    %v865 = vld [vmem:[#allocation5 + $0x398] sm:$0xff]
    %v866 = vld [vmem:[#allocation5 + $0x3a0] sm:$0xff]
    %v867 = vld [vmem:[#allocation5 + $0x3a8] sm:$0xff]
    %v868 = vld [vmem:[#allocation5 + $0x3b0] sm:$0xff]
    %v869 = vld [vmem:[#allocation5 + $0x3b8] sm:$0xff]
    %v870 = vld [vmem:[#allocation5 + $0x3c0] sm:$0xff]
    %v871 = vld [vmem:[#allocation5 + $0x3c8] sm:$0xff]
    %v872 = vld [vmem:[#allocation5 + $0x3d0] sm:$0xff]
    %v873 = vld [vmem:[#allocation5 + $0x3d8] sm:$0xff]
    %v874 = vld [vmem:[#allocation5 + $0x3e0] sm:$0xff]
    %v875 = vld [vmem:[#allocation5 + $0x3e8] sm:$0xff]
    %v876 = vld [vmem:[#allocation5 + $0x3f0] sm:$0xff]
    %v877 = vld [vmem:[#allocation5 + $0x3f8] sm:$0xff]
    %v878 = vunpack.c.l.bf16 %v750
    %v879 = vunpack.c.h.bf16 %v750
    %v880 = vunpack.c.l.bf16 %v751
    %v881 = vunpack.c.h.bf16 %v751
    %v882 = vunpack.c.l.bf16 %v752
    %v883 = vunpack.c.h.bf16 %v752
    %v884 = vunpack.c.l.bf16 %v753
    %v885 = vunpack.c.h.bf16 %v753
    %v886 = vunpack.c.l.bf16 %v754
    %v887 = vunpack.c.h.bf16 %v754
    %v888 = vunpack.c.l.bf16 %v755
    %v889 = vunpack.c.h.bf16 %v755
    %v890 = vunpack.c.l.bf16 %v756
    %v891 = vunpack.c.h.bf16 %v756
    %v892 = vunpack.c.l.bf16 %v757
    %v893 = vunpack.c.h.bf16 %v757
    %v894 = vunpack.c.l.bf16 %v758
    %v895 = vunpack.c.h.bf16 %v758
    %v896 = vunpack.c.l.bf16 %v759
    %v897 = vunpack.c.h.bf16 %v759
    %v898 = vunpack.c.l.bf16 %v760
    %v899 = vunpack.c.h.bf16 %v760
    %v900 = vunpack.c.l.bf16 %v761
    %v901 = vunpack.c.h.bf16 %v761
    %v902 = vunpack.c.l.bf16 %v762
    %v903 = vunpack.c.h.bf16 %v762
    %v904 = vunpack.c.l.bf16 %v763
    %v905 = vunpack.c.h.bf16 %v763
    %v906 = vunpack.c.l.bf16 %v764
    %v907 = vunpack.c.h.bf16 %v764
    %v908 = vunpack.c.l.bf16 %v765
    %v909 = vunpack.c.h.bf16 %v765
    %v910 = vunpack.c.l.bf16 %v766
    %v911 = vunpack.c.h.bf16 %v766
    %v912 = vunpack.c.l.bf16 %v767
    %v913 = vunpack.c.h.bf16 %v767
    %v914 = vunpack.c.l.bf16 %v768
    %v915 = vunpack.c.h.bf16 %v768
    %v916 = vunpack.c.l.bf16 %v769
    %v917 = vunpack.c.h.bf16 %v769
    %v918 = vunpack.c.l.bf16 %v770
    %v919 = vunpack.c.h.bf16 %v770
    %v920 = vunpack.c.l.bf16 %v771
    %v921 = vunpack.c.h.bf16 %v771
    %v922 = vunpack.c.l.bf16 %v772
    %v923 = vunpack.c.h.bf16 %v772
    %v924 = vunpack.c.l.bf16 %v773
    %v925 = vunpack.c.h.bf16 %v773
    %v926 = vunpack.c.l.bf16 %v774
    %v927 = vunpack.c.h.bf16 %v774
    %v928 = vunpack.c.l.bf16 %v775
    %v929 = vunpack.c.h.bf16 %v775
    %v930 = vunpack.c.l.bf16 %v776
    %v931 = vunpack.c.h.bf16 %v776
    %v932 = vunpack.c.l.bf16 %v777
    %v933 = vunpack.c.h.bf16 %v777
    %v934 = vunpack.c.l.bf16 %v778
    %v935 = vunpack.c.h.bf16 %v778
    %v936 = vunpack.c.l.bf16 %v779
    %v937 = vunpack.c.h.bf16 %v779
    %v938 = vunpack.c.l.bf16 %v780
    %v939 = vunpack.c.h.bf16 %v780
    %v940 = vunpack.c.l.bf16 %v781
    %v941 = vunpack.c.h.bf16 %v781
    %v942 = vunpack.c.l.bf16 %v782
    %v943 = vunpack.c.h.bf16 %v782
    %v944 = vunpack.c.l.bf16 %v783
    %v945 = vunpack.c.h.bf16 %v783
    %v946 = vunpack.c.l.bf16 %v784
    %v947 = vunpack.c.h.bf16 %v784
    %v948 = vunpack.c.l.bf16 %v785
    %v949 = vunpack.c.h.bf16 %v785
    %v950 = vunpack.c.l.bf16 %v786
    %v951 = vunpack.c.h.bf16 %v786
    %v952 = vunpack.c.l.bf16 %v787
    %v953 = vunpack.c.h.bf16 %v787
    %v954 = vunpack.c.l.bf16 %v788
    %v955 = vunpack.c.h.bf16 %v788
    %v956 = vunpack.c.l.bf16 %v789
    %v957 = vunpack.c.h.bf16 %v789
    %v958 = vunpack.c.l.bf16 %v790
    %v959 = vunpack.c.h.bf16 %v790
    %v960 = vunpack.c.l.bf16 %v791
    %v961 = vunpack.c.h.bf16 %v791
    %v962 = vunpack.c.l.bf16 %v792
    %v963 = vunpack.c.h.bf16 %v792
    %v964 = vunpack.c.l.bf16 %v793
    %v965 = vunpack.c.h.bf16 %v793
    %v966 = vunpack.c.l.bf16 %v794
    %v967 = vunpack.c.h.bf16 %v794
    %v968 = vunpack.c.l.bf16 %v795
    %v969 = vunpack.c.h.bf16 %v795
    %v970 = vunpack.c.l.bf16 %v796
    %v971 = vunpack.c.h.bf16 %v796
    %v972 = vunpack.c.l.bf16 %v797
    %v973 = vunpack.c.h.bf16 %v797
    %v974 = vunpack.c.l.bf16 %v798
    %v975 = vunpack.c.h.bf16 %v798
    %v976 = vunpack.c.l.bf16 %v799
    %v977 = vunpack.c.h.bf16 %v799
    %v978 = vunpack.c.l.bf16 %v800
    %v979 = vunpack.c.h.bf16 %v800
    %v980 = vunpack.c.l.bf16 %v801
    %v981 = vunpack.c.h.bf16 %v801
    %v982 = vunpack.c.l.bf16 %v802
    %v983 = vunpack.c.h.bf16 %v802
    %v984 = vunpack.c.l.bf16 %v803
    %v985 = vunpack.c.h.bf16 %v803
    %v986 = vunpack.c.l.bf16 %v804
    %v987 = vunpack.c.h.bf16 %v804
    %v988 = vunpack.c.l.bf16 %v805
    %v989 = vunpack.c.h.bf16 %v805
    %v990 = vunpack.c.l.bf16 %v806
    %v991 = vunpack.c.h.bf16 %v806
    %v992 = vunpack.c.l.bf16 %v807
    %v993 = vunpack.c.h.bf16 %v807
    %v994 = vunpack.c.l.bf16 %v808
    %v995 = vunpack.c.h.bf16 %v808
    %v996 = vunpack.c.l.bf16 %v809
    %v997 = vunpack.c.h.bf16 %v809
    %v998 = vunpack.c.l.bf16 %v810
    %v999 = vunpack.c.h.bf16 %v810
    %v1000 = vunpack.c.l.bf16 %v811
    %v1001 = vunpack.c.h.bf16 %v811
    %v1002 = vunpack.c.l.bf16 %v812
    %v1003 = vunpack.c.h.bf16 %v812
    %v1004 = vunpack.c.l.bf16 %v813
    %v1005 = vunpack.c.h.bf16 %v813
    %v1006 = vunpack.c.l.bf16 %v814
    %v1007 = vunpack.c.h.bf16 %v814
    %v1008 = vunpack.c.l.bf16 %v815
    %v1009 = vunpack.c.h.bf16 %v815
    %v1010 = vunpack.c.l.bf16 %v816
    %v1011 = vunpack.c.h.bf16 %v816
    %v1012 = vunpack.c.l.bf16 %v817
    %v1013 = vunpack.c.h.bf16 %v817
    %v1014 = vunpack.c.l.bf16 %v818
    %v1015 = vunpack.c.h.bf16 %v818
    %v1016 = vunpack.c.l.bf16 %v819
    %v1017 = vunpack.c.h.bf16 %v819
    %v1018 = vunpack.c.l.bf16 %v820
    %v1019 = vunpack.c.h.bf16 %v820
    %v1020 = vunpack.c.l.bf16 %v821
    %v1021 = vunpack.c.h.bf16 %v821
    %v1022 = vunpack.c.l.bf16 %v822
    %v1023 = vunpack.c.h.bf16 %v822
    %v1024 = vunpack.c.l.bf16 %v823
    %v1025 = vunpack.c.h.bf16 %v823
    %v1026 = vunpack.c.l.bf16 %v824
    %v1027 = vunpack.c.h.bf16 %v824
    %v1028 = vunpack.c.l.bf16 %v825
    %v1029 = vunpack.c.h.bf16 %v825
    %v1030 = vunpack.c.l.bf16 %v826
    %v1031 = vunpack.c.h.bf16 %v826
    %v1032 = vunpack.c.l.bf16 %v827
    %v1033 = vunpack.c.h.bf16 %v827
    %v1034 = vunpack.c.l.bf16 %v828
    %v1035 = vunpack.c.h.bf16 %v828
    %v1036 = vunpack.c.l.bf16 %v829
    %v1037 = vunpack.c.h.bf16 %v829
    %v1038 = vunpack.c.l.bf16 %v830
    %v1039 = vunpack.c.h.bf16 %v830
    %v1040 = vunpack.c.l.bf16 %v831
    %v1041 = vunpack.c.h.bf16 %v831
    %v1042 = vunpack.c.l.bf16 %v832
    %v1043 = vunpack.c.h.bf16 %v832
    %v1044 = vunpack.c.l.bf16 %v833
    %v1045 = vunpack.c.h.bf16 %v833
    %v1046 = vunpack.c.l.bf16 %v834
    %v1047 = vunpack.c.h.bf16 %v834
    %v1048 = vunpack.c.l.bf16 %v835
    %v1049 = vunpack.c.h.bf16 %v835
    %v1050 = vunpack.c.l.bf16 %v836
    %v1051 = vunpack.c.h.bf16 %v836
    %v1052 = vunpack.c.l.bf16 %v837
    %v1053 = vunpack.c.h.bf16 %v837
    %v1054 = vunpack.c.l.bf16 %v838
    %v1055 = vunpack.c.h.bf16 %v838
    %v1056 = vunpack.c.l.bf16 %v839
    %v1057 = vunpack.c.h.bf16 %v839
    %v1058 = vunpack.c.l.bf16 %v840
    %v1059 = vunpack.c.h.bf16 %v840
    %v1060 = vunpack.c.l.bf16 %v841
    %v1061 = vunpack.c.h.bf16 %v841
    %v1062 = vunpack.c.l.bf16 %v842
    %v1063 = vunpack.c.h.bf16 %v842
    %v1064 = vunpack.c.l.bf16 %v843
    %v1065 = vunpack.c.h.bf16 %v843
    %v1066 = vunpack.c.l.bf16 %v844
    %v1067 = vunpack.c.h.bf16 %v844
    %v1068 = vunpack.c.l.bf16 %v845
    %v1069 = vunpack.c.h.bf16 %v845
    %v1070 = vunpack.c.l.bf16 %v846
    %v1071 = vunpack.c.h.bf16 %v846
    %v1072 = vunpack.c.l.bf16 %v847
    %v1073 = vunpack.c.h.bf16 %v847
    %v1074 = vunpack.c.l.bf16 %v848
    %v1075 = vunpack.c.h.bf16 %v848
    %v1076 = vunpack.c.l.bf16 %v849
    %v1077 = vunpack.c.h.bf16 %v849
    %v1078 = vunpack.c.l.bf16 %v850
    %v1079 = vunpack.c.h.bf16 %v850
    %v1080 = vunpack.c.l.bf16 %v851
    %v1081 = vunpack.c.h.bf16 %v851
    %v1082 = vunpack.c.l.bf16 %v852
    %v1083 = vunpack.c.h.bf16 %v852
    %v1084 = vunpack.c.l.bf16 %v853
    %v1085 = vunpack.c.h.bf16 %v853
    %v1086 = vunpack.c.l.bf16 %v854
    %v1087 = vunpack.c.h.bf16 %v854
    %v1088 = vunpack.c.l.bf16 %v855
    %v1089 = vunpack.c.h.bf16 %v855
    %v1090 = vunpack.c.l.bf16 %v856
    %v1091 = vunpack.c.h.bf16 %v856
    %v1092 = vunpack.c.l.bf16 %v857
    %v1093 = vunpack.c.h.bf16 %v857
    %v1094 = vunpack.c.l.bf16 %v858
    %v1095 = vunpack.c.h.bf16 %v858
    %v1096 = vunpack.c.l.bf16 %v859
    %v1097 = vunpack.c.h.bf16 %v859
    %v1098 = vunpack.c.l.bf16 %v860
    %v1099 = vunpack.c.h.bf16 %v860
    %v1100 = vunpack.c.l.bf16 %v861
    %v1101 = vunpack.c.h.bf16 %v861
    %v1102 = vunpack.c.l.bf16 %v862
    %v1103 = vunpack.c.h.bf16 %v862
    %v1104 = vunpack.c.l.bf16 %v863
    %v1105 = vunpack.c.h.bf16 %v863
    %v1106 = vunpack.c.l.bf16 %v864
    %v1107 = vunpack.c.h.bf16 %v864
    %v1108 = vunpack.c.l.bf16 %v865
    %v1109 = vunpack.c.h.bf16 %v865
    %v1110 = vunpack.c.l.bf16 %v866
    %v1111 = vunpack.c.h.bf16 %v866
    %v1112 = vunpack.c.l.bf16 %v867
    %v1113 = vunpack.c.h.bf16 %v867
    %v1114 = vunpack.c.l.bf16 %v868
    %v1115 = vunpack.c.h.bf16 %v868
    %v1116 = vunpack.c.l.bf16 %v869
    %v1117 = vunpack.c.h.bf16 %v869
    %v1118 = vunpack.c.l.bf16 %v870
    %v1119 = vunpack.c.h.bf16 %v870
    %v1120 = vunpack.c.l.bf16 %v871
    %v1121 = vunpack.c.h.bf16 %v871
    %v1122 = vunpack.c.l.bf16 %v872
    %v1123 = vunpack.c.h.bf16 %v872
    %v1124 = vunpack.c.l.bf16 %v873
    %v1125 = vunpack.c.h.bf16 %v873
    %v1126 = vunpack.c.l.bf16 %v874
    %v1127 = vunpack.c.h.bf16 %v874
    %v1128 = vunpack.c.l.bf16 %v875
    %v1129 = vunpack.c.h.bf16 %v875
    %v1130 = vunpack.c.l.bf16 %v876
    %v1131 = vunpack.c.h.bf16 %v876
    %v1132 = vunpack.c.l.bf16 %v877
    %v1133 = vunpack.c.h.bf16 %v877
    %v1134 = vld [vmem:[%s4] sm:$0xf]
    %v1136 = vlaneseq
    %v1137 = vshrl.u32 %v1136, 7
    %v1138 = vsub.s32 0, %v1137
    %v1139 = vrot.slane %v1134, %v1138
    %v1140 = vlaneseq
    %v1141 = vshrl.u32 %v1140, 7
    %v1142 = vsub.s32 1, %v1141
    %v1143 = vrot.slane %v1134, %v1142
    %v1144 = vlaneseq
    %v1145 = vshrl.u32 %v1144, 7
    %v1146 = vsub.s32 2, %v1145
    %v1147 = vrot.slane %v1134, %v1146
    %v1148 = vlaneseq
    %v1149 = vshrl.u32 %v1148, 7
    %v1150 = vsub.s32 3, %v1149
    %v1151 = vrot.slane %v1134, %v1150
    %1156 = vmatprep.subr.mxu0 %v879
    %1157 = vmatpush1.msra.mxu0 %v878
    %1158 = vmatprep.subr.mxu0 %v883
    %1159 = vmatpush1.msra.mxu0 %v882
    %1160 = vmatprep.subr.mxu0 %v887
    %1161 = vmatpush1.msra.mxu0 %v886
    %1162 = vmatprep.subr.mxu0 %v891
    %1163 = vmatpush1.msra.mxu0 %v890
    %1164 = vmatprep.subr.mxu0 %v895
    %1165 = vmatpush1.msra.mxu0 %v894
    %1166 = vmatprep.subr.mxu0 %v899
    %1167 = vmatpush1.msra.mxu0 %v898
    %1168 = vmatprep.subr.mxu0 %v903
    %1169 = vmatpush1.msra.mxu0 %v902
    %1170 = vmatprep.subr.mxu0 %v907
    %1171 = vmatpush1.msra.mxu0 %v906
    %1172 = vmatprep.subr.mxu0 %v911
    %1173 = vmatpush1.msra.mxu0 %v910
    %1174 = vmatprep.subr.mxu0 %v915
    %1175 = vmatpush1.msra.mxu0 %v914
    %1176 = vmatprep.subr.mxu0 %v919
    %1177 = vmatpush1.msra.mxu0 %v918
    %1178 = vmatprep.subr.mxu0 %v923
    %1179 = vmatpush1.msra.mxu0 %v922
    %1180 = vmatprep.subr.mxu0 %v927
    %1181 = vmatpush1.msra.mxu0 %v926
    %1182 = vmatprep.subr.mxu0 %v931
    %1183 = vmatpush1.msra.mxu0 %v930
    %1184 = vmatprep.subr.mxu0 %v935
    %1185 = vmatpush1.msra.mxu0 %v934
    %1186 = vmatprep.subr.mxu0 %v939
    %1187 = vmatpush1.msra.mxu0 %v938
    %1188 = vmatprep.subr.mxu0 %v943
    %1189 = vmatpush1.msra.mxu0 %v942
    %1190 = vmatprep.subr.mxu0 %v947
    %1191 = vmatpush1.msra.mxu0 %v946
    %1192 = vmatprep.subr.mxu0 %v951
    %1193 = vmatpush1.msra.mxu0 %v950
    %1194 = vmatprep.subr.mxu0 %v955
    %1195 = vmatpush1.msra.mxu0 %v954
    %1196 = vmatprep.subr.mxu0 %v959
    %1197 = vmatpush1.msra.mxu0 %v958
    %1198 = vmatprep.subr.mxu0 %v963
    %1199 = vmatpush1.msra.mxu0 %v962
    %1200 = vmatprep.subr.mxu0 %v967
    %1201 = vmatpush1.msra.mxu0 %v966
    %1202 = vmatprep.subr.mxu0 %v971
    %1203 = vmatpush1.msra.mxu0 %v970
    %1204 = vmatprep.subr.mxu0 %v975
    %1205 = vmatpush1.msra.mxu0 %v974
    %1206 = vmatprep.subr.mxu0 %v979
    %1207 = vmatpush1.msra.mxu0 %v978
    %1208 = vmatprep.subr.mxu0 %v983
    %1209 = vmatpush1.msra.mxu0 %v982
    %1210 = vmatprep.subr.mxu0 %v987
    %1211 = vmatpush1.msra.mxu0 %v986
    %1212 = vmatprep.subr.mxu0 %v991
    %1213 = vmatpush1.msra.mxu0 %v990
    %1214 = vmatprep.subr.mxu0 %v995
    %1215 = vmatpush1.msra.mxu0 %v994
    %1216 = vmatprep.subr.mxu0 %v999
    %1217 = vmatpush1.msra.mxu0 %v998
    %1218 = vmatprep.subr.mxu0 %v1003
    %1219 = vmatpush1.msra.mxu0 %v1002
    %1220 = vmatprep.mubr.f32.mxu0 %v53
    %1221 = vmatmul.mubr.f32.gmra.mrb[0].mxu0 %v52
    %v1222 = vpop.f32.mrb[0].mxu0
    %v1223 = vadd.f32 %v1139, %v1222
    %v1224 = vpop.f32.mrb[0].mxu0
    %v1225 = vadd.f32 %v1143, %v1224
    %1226 = vdwg.mxu0
    %1227 = vmatprep.subr.mxu0 %v1007
    %1228 = vmatpush1.msra.mxu0 %v1006
    %1229 = vmatprep.subr.mxu0 %v1011
    %1230 = vmatpush1.msra.mxu0 %v1010
    %1231 = vmatprep.subr.mxu0 %v1015
    %1232 = vmatpush1.msra.mxu0 %v1014
    %1233 = vmatprep.subr.mxu0 %v1019
    %1234 = vmatpush1.msra.mxu0 %v1018
    %1235 = vmatprep.subr.mxu0 %v1023
    %1236 = vmatpush1.msra.mxu0 %v1022
    %1237 = vmatprep.subr.mxu0 %v1027
    %1238 = vmatpush1.msra.mxu0 %v1026
    %1239 = vmatprep.subr.mxu0 %v1031
    %1240 = vmatpush1.msra.mxu0 %v1030
    %1241 = vmatprep.subr.mxu0 %v1035
    %1242 = vmatpush1.msra.mxu0 %v1034
    %1243 = vmatprep.subr.mxu0 %v1039
    %1244 = vmatpush1.msra.mxu0 %v1038
    %1245 = vmatprep.subr.mxu0 %v1043
    %1246 = vmatpush1.msra.mxu0 %v1042
    %1247 = vmatprep.subr.mxu0 %v1047
    %1248 = vmatpush1.msra.mxu0 %v1046
    %1249 = vmatprep.subr.mxu0 %v1051
    %1250 = vmatpush1.msra.mxu0 %v1050
    %1251 = vmatprep.subr.mxu0 %v1055
    %1252 = vmatpush1.msra.mxu0 %v1054
    %1253 = vmatprep.subr.mxu0 %v1059
    %1254 = vmatpush1.msra.mxu0 %v1058
    %1255 = vmatprep.subr.mxu0 %v1063
    %1256 = vmatpush1.msra.mxu0 %v1062
    %1257 = vmatprep.subr.mxu0 %v1067
    %1258 = vmatpush1.msra.mxu0 %v1066
    %1259 = vmatprep.subr.mxu0 %v1071
    %1260 = vmatpush1.msra.mxu0 %v1070
    %1261 = vmatprep.subr.mxu0 %v1075
    %1262 = vmatpush1.msra.mxu0 %v1074
    %1263 = vmatprep.subr.mxu0 %v1079
    %1264 = vmatpush1.msra.mxu0 %v1078
    %1265 = vmatprep.subr.mxu0 %v1083
    %1266 = vmatpush1.msra.mxu0 %v1082
    %1267 = vmatprep.subr.mxu0 %v1087
    %1268 = vmatpush1.msra.mxu0 %v1086
    %1269 = vmatprep.subr.mxu0 %v1091
    %1270 = vmatpush1.msra.mxu0 %v1090
    %1271 = vmatprep.subr.mxu0 %v1095
    %1272 = vmatpush1.msra.mxu0 %v1094
    %1273 = vmatprep.subr.mxu0 %v1099
    %1274 = vmatpush1.msra.mxu0 %v1098
    %1275 = vmatprep.subr.mxu0 %v1103
    %1276 = vmatpush1.msra.mxu0 %v1102
    %1277 = vmatprep.subr.mxu0 %v1107
    %1278 = vmatpush1.msra.mxu0 %v1106
    %1279 = vmatprep.subr.mxu0 %v1111
    %1280 = vmatpush1.msra.mxu0 %v1110
    %1281 = vmatprep.subr.mxu0 %v1115
    %1282 = vmatpush1.msra.mxu0 %v1114
    %1283 = vmatprep.subr.mxu0 %v1119
    %1284 = vmatpush1.msra.mxu0 %v1118
    %1285 = vmatprep.subr.mxu0 %v1123
    %1286 = vmatpush1.msra.mxu0 %v1122
    %1287 = vmatprep.subr.mxu0 %v1127
    %1288 = vmatpush1.msra.mxu0 %v1126
    %1289 = vmatprep.subr.mxu0 %v1131
    %1290 = vmatpush1.msra.mxu0 %v1130
    %1291 = vmatprep.mubr.f32.mxu0 %v55
    %1292 = vmatmul.mubr.f32.gmra.mrb[0].mxu0 %v54
    %v1293 = vpop.f32.mrb[0].mxu0
    %v1294 = vadd.f32 %v1223, %v1293
    %v1295 = vpop.f32.mrb[0].mxu0
    %v1296 = vadd.f32 %v1225, %v1295
    %1297 = vdwg.mxu0
    %1298 = vmatprep.subr.mxu0 %v881
    %1299 = vmatpush1.msra.mxu0 %v880
    %1300 = vmatprep.subr.mxu0 %v885
    %1301 = vmatpush1.msra.mxu0 %v884
    %1302 = vmatprep.subr.mxu0 %v889
    %1303 = vmatpush1.msra.mxu0 %v888
    %1304 = vmatprep.subr.mxu0 %v893
    %1305 = vmatpush1.msra.mxu0 %v892
    %1306 = vmatprep.subr.mxu0 %v897
    %1307 = vmatpush1.msra.mxu0 %v896
    %1308 = vmatprep.subr.mxu0 %v901
    %1309 = vmatpush1.msra.mxu0 %v900
    %1310 = vmatprep.subr.mxu0 %v905
    %1311 = vmatpush1.msra.mxu0 %v904
    %1312 = vmatprep.subr.mxu0 %v909
    %1313 = vmatpush1.msra.mxu0 %v908
    %1314 = vmatprep.subr.mxu0 %v913
    %1315 = vmatpush1.msra.mxu0 %v912
    %1316 = vmatprep.subr.mxu0 %v917
    %1317 = vmatpush1.msra.mxu0 %v916
    %1318 = vmatprep.subr.mxu0 %v921
    %1319 = vmatpush1.msra.mxu0 %v920
    %1320 = vmatprep.subr.mxu0 %v925
    %1321 = vmatpush1.msra.mxu0 %v924
    %1322 = vmatprep.subr.mxu0 %v929
    %1323 = vmatpush1.msra.mxu0 %v928
    %1324 = vmatprep.subr.mxu0 %v933
    %1325 = vmatpush1.msra.mxu0 %v932
    %1326 = vmatprep.subr.mxu0 %v937
    %1327 = vmatpush1.msra.mxu0 %v936
    %1328 = vmatprep.subr.mxu0 %v941
    %1329 = vmatpush1.msra.mxu0 %v940
    %1330 = vmatprep.subr.mxu0 %v945
    %1331 = vmatpush1.msra.mxu0 %v944
    %1332 = vmatprep.subr.mxu0 %v949
    %1333 = vmatpush1.msra.mxu0 %v948
    %1334 = vmatprep.subr.mxu0 %v953
    %1335 = vmatpush1.msra.mxu0 %v952
    %1336 = vmatprep.subr.mxu0 %v957
    %1337 = vmatpush1.msra.mxu0 %v956
    %1338 = vmatprep.subr.mxu0 %v961
    %1339 = vmatpush1.msra.mxu0 %v960
    %1340 = vmatprep.subr.mxu0 %v965
    %1341 = vmatpush1.msra.mxu0 %v964
    %1342 = vmatprep.subr.mxu0 %v969
    %1343 = vmatpush1.msra.mxu0 %v968
    %1344 = vmatprep.subr.mxu0 %v973
    %1345 = vmatpush1.msra.mxu0 %v972
    %1346 = vmatprep.subr.mxu0 %v977
    %1347 = vmatpush1.msra.mxu0 %v976
    %1348 = vmatprep.subr.mxu0 %v981
    %1349 = vmatpush1.msra.mxu0 %v980
    %1350 = vmatprep.subr.mxu0 %v985
    %1351 = vmatpush1.msra.mxu0 %v984
    %1352 = vmatprep.subr.mxu0 %v989
    %1353 = vmatpush1.msra.mxu0 %v988
    %1354 = vmatprep.subr.mxu0 %v993
    %1355 = vmatpush1.msra.mxu0 %v992
    %1356 = vmatprep.subr.mxu0 %v997
    %1357 = vmatpush1.msra.mxu0 %v996
    %1358 = vmatprep.subr.mxu0 %v1001
    %1359 = vmatpush1.msra.mxu0 %v1000
    %1360 = vmatprep.subr.mxu0 %v1005
    %1361 = vmatpush1.msra.mxu0 %v1004
    %1362 = vmatprep.mubr.f32.mxu0 %v53
    %1363 = vmatmul.mubr.f32.gmra.mrb[0].mxu0 %v52
    %v1364 = vpop.f32.mrb[0].mxu0
    %v1365 = vadd.f32 %v1147, %v1364
    %v1366 = vpop.f32.mrb[0].mxu0
    %v1367 = vadd.f32 %v1151, %v1366
    %1368 = vdwg.mxu0
    %1369 = vmatprep.subr.mxu0 %v1009
    %1370 = vmatpush1.msra.mxu0 %v1008
    %1371 = vmatprep.subr.mxu0 %v1013
    %1372 = vmatpush1.msra.mxu0 %v1012
    %1373 = vmatprep.subr.mxu0 %v1017
    %1374 = vmatpush1.msra.mxu0 %v1016
    %1375 = vmatprep.subr.mxu0 %v1021
    %1376 = vmatpush1.msra.mxu0 %v1020
    %1377 = vmatprep.subr.mxu0 %v1025
    %1378 = vmatpush1.msra.mxu0 %v1024
    %1379 = vmatprep.subr.mxu0 %v1029
    %1380 = vmatpush1.msra.mxu0 %v1028
    %1381 = vmatprep.subr.mxu0 %v1033
    %1382 = vmatpush1.msra.mxu0 %v1032
    %1383 = vmatprep.subr.mxu0 %v1037
    %1384 = vmatpush1.msra.mxu0 %v1036
    %1385 = vmatprep.subr.mxu0 %v1041
    %1386 = vmatpush1.msra.mxu0 %v1040
    %1387 = vmatprep.subr.mxu0 %v1045
    %1388 = vmatpush1.msra.mxu0 %v1044
    %1389 = vmatprep.subr.mxu0 %v1049
    %1390 = vmatpush1.msra.mxu0 %v1048
    %1391 = vmatprep.subr.mxu0 %v1053
    %1392 = vmatpush1.msra.mxu0 %v1052
    %1393 = vmatprep.subr.mxu0 %v1057
    %1394 = vmatpush1.msra.mxu0 %v1056
    %1395 = vmatprep.subr.mxu0 %v1061
    %1396 = vmatpush1.msra.mxu0 %v1060
    %1397 = vmatprep.subr.mxu0 %v1065
    %1398 = vmatpush1.msra.mxu0 %v1064
    %1399 = vmatprep.subr.mxu0 %v1069
    %1400 = vmatpush1.msra.mxu0 %v1068
    %1401 = vmatprep.subr.mxu0 %v1073
    %1402 = vmatpush1.msra.mxu0 %v1072
    %1403 = vmatprep.subr.mxu0 %v1077
    %1404 = vmatpush1.msra.mxu0 %v1076
    %1405 = vmatprep.subr.mxu0 %v1081
    %1406 = vmatpush1.msra.mxu0 %v1080
    %1407 = vmatprep.subr.mxu0 %v1085
    %1408 = vmatpush1.msra.mxu0 %v1084
    %1409 = vmatprep.subr.mxu0 %v1089
    %1410 = vmatpush1.msra.mxu0 %v1088
    %1411 = vmatprep.subr.mxu0 %v1093
    %1412 = vmatpush1.msra.mxu0 %v1092
    %1413 = vmatprep.subr.mxu0 %v1097
    %1414 = vmatpush1.msra.mxu0 %v1096
    %1415 = vmatprep.subr.mxu0 %v1101
    %1416 = vmatpush1.msra.mxu0 %v1100
    %1417 = vmatprep.subr.mxu0 %v1105
    %1418 = vmatpush1.msra.mxu0 %v1104
    %1419 = vmatprep.subr.mxu0 %v1109
    %1420 = vmatpush1.msra.mxu0 %v1108
    %1421 = vmatprep.subr.mxu0 %v1113
    %1422 = vmatpush1.msra.mxu0 %v1112
    %1423 = vmatprep.subr.mxu0 %v1117
    %1424 = vmatpush1.msra.mxu0 %v1116
    %1425 = vmatprep.subr.mxu0 %v1121
    %1426 = vmatpush1.msra.mxu0 %v1120
    %1427 = vmatprep.subr.mxu0 %v1125
    %1428 = vmatpush1.msra.mxu0 %v1124
    %1429 = vmatprep.subr.mxu0 %v1129
    %1430 = vmatpush1.msra.mxu0 %v1128
    %1431 = vmatprep.subr.mxu0 %v1133
    %1432 = vmatpush1.msra.mxu0 %v1132
    %1433 = vmatprep.mubr.f32.mxu0 %v55
    %1434 = vmatmul.mubr.f32.gmra.mrb[0].mxu0 %v54
    %v1435 = vpop.f32.mrb[0].mxu0
    %v1436 = vadd.f32 %v1365, %v1435
    %v1437 = vpop.f32.mrb[0].mxu0
    %v1438 = vadd.f32 %v1367, %v1437
    %1439 = vdwg.mxu0
    %1440 = vst [vmem:[#allocation8] sm:$0xff] %v1294
    %1441 = vst [vmem:[#allocation8 + $0x8] sm:$0xff] %v1296
    %1442 = vst [vmem:[#allocation8 + $0x10] sm:$0xff] %v1436
    %1443 = vst [vmem:[#allocation8 + $0x18] sm:$0xff] %v1438
    // Predicated region
    $region30: #{context_to_latent_forward.1} parent=1 // pred_check
      _
    $region31: #{context_to_latent_forward.1} parent=1 // pred_check_branch
      %1445 = sbr.rel (0) target = $region33
    $region32: #{context_to_latent_forward.1} parent=1 // pred_region
      %s1447 = ssub.s32 512, 512
      %1448 = vsyncadd [#allocation4], %s1447
      %s1450 = sshll.u32 [#allocation7], 4
      %s1451 = int_to_ptr.vmem [resolvable:$true] %s1450
      %1453 = dma.vmem_to_hbm [thread:$0]  %s1451, 512, %s5, [#allocation4]
    $region33: #{context_to_latent_forward.1} parent=1 // pred_fallthru
      _
    // Predicated region
    $region34: #{context_to_latent_forward.1} parent=1 // pred_check
      _
    $region35: #{context_to_latent_forward.1} parent=1 // pred_check_branch
      %1455 = sbr.rel (0) target = $region37
    $region36: #{context_to_latent_forward.1} parent=1 // pred_region
      %s1457 = ssub.s32 512, 512
      %1458 = vsyncadd [#allocation9], %s1457
      %s1460 = sshll.u32 [#allocation8], 4
      %s1461 = int_to_ptr.vmem [resolvable:$true] %s1460
      %1463 = dma.vmem_to_hbm [thread:$0]  %s1461, 512, %s6, [#allocation9]
    $region37: #{context_to_latent_forward.1} parent=1 // pred_fallthru
      _
    // Predicated region
    $region38: #{context_to_latent_forward.1} parent=1 // pred_check
      _
    $region39: #{context_to_latent_forward.1} parent=1 // pred_check_branch
      %1465 = sbr.rel (0) target = $region41
    $region40: #{context_to_latent_forward.1} parent=1 // pred_region
      %1466 = dma.done [#allocation4], 512
    $region41: #{context_to_latent_forward.1} parent=1 // pred_fallthru
      _
    // Predicated region
    $region42: #{context_to_latent_forward.1} parent=1 // pred_check
      _
    $region43: #{context_to_latent_forward.1} parent=1 // pred_check_branch
      %1468 = sbr.rel (0) target = $region45
    $region44: #{context_to_latent_forward.1} parent=1 // pred_region
      %1469 = dma.done [#allocation9], 512
    $region45: #{context_to_latent_forward.1} parent=1 // pred_fallthru
      _
    %1470 = vsyncpa [#allocation3], 1
    %1471 = vsyncpa [#allocation6], 1
    %1472 = vsyncpa [#allocation4], 1
    %1473 = vsyncpa [#allocation9], 1

</llo_original>
